<compile_context>
chip_gen: v5e
topology: v5e:2x2
jax: 0.10.0
libtpu: 0.0.40
codegen_flags: <defaults>
</compile_context>

<pallas_src>
import functools

import jax
import jax.numpy as jnp
from jax.experimental import pallas as pl
from jax.experimental.pallas import tpu as pltpu

_LANES = 128
_TILE_TARGET = 512        # lanes per tile (~85% of HBM roofline per tile sweep)
_BN_EPS = 1e-5


# ---------------------------------------------------------------------------
# fused kernel
# ---------------------------------------------------------------------------

def _inception_kernel(*refs, T, n_real, offs_ms, offs_mp, cb, cin, cout,
                      n_ms_rows, shortcut, eps):
    """One grid step = one (pass, lane-tile) pair.

    pass 0: compute pre-BN branch outputs, accumulate per-channel sum / sumsq.
    pass 1: recompute branch outputs, apply BN scale/shift + residual + ReLU.
    Activations are channels-major (C, TILE) with flat n = b*T + t on lanes.
    """
    it = iter(refs)
    pos_ref = next(it)            # (1, W)  int32 time index t, < 0 for pad cols
    x_ref = next(it)              # (Cin, W)
    wx_ref = next(it)             # (Cb [+ Cout], Cin)  bottleneck [+ shortcut] 1x1
    bb_ref = next(it)             # (Cb, 1) bottleneck bias (kept)
    wms_ref = next(it)            # (K*c_br, nD*Cb)  fused multi-scale weights
    wmp_ref = next(it)            # (c_br, kb*Cin)   fused maxpool-branch weights
    g1_ref = next(it)             # (Cout, 1) inception BN gamma
    b1_ref = next(it)             # (Cout, 1) inception BN beta
    if shortcut:
        g2_ref = next(it)         # (Cout, 1) shortcut BN gamma
        b2_ref = next(it)         # (Cout, 1) shortcut BN beta
    o_ref = next(it)              # (Cout, W)
    ystk_ref = next(it)           # (nD*Cb, W)   stacked bottleneck taps (scratch)
    mstk_ref = next(it)           # (kb*Cin, W)  stacked maxpool taps  (scratch)
    ysum_ref = next(it)           # (Cout, 1) BN sum      (persists across grid)
    yssq_ref = next(it)           # (Cout, 1) BN sum-sq   (persists across grid)
    if shortcut:
        ssum_ref = next(it)       # (Cout, 1) shortcut BN sum
        sssq_ref = next(it)       # (Cout, 1) shortcut BN sum-sq

    f32 = jnp.float32
    p = pl.program_id(0)          # 0: stats pass, 1: apply pass
    n = pl.program_id(1)          # lane-tile index

    pos = pos_ref[...]                         # (1, W)
    valid = pos >= 0
    x = x_ref[...].astype(f32)                 # (Cin, W)

    # Shifted copies go through the XLU (roll); validity masks are computed once
    # per offset and shared across every branch (deduped VALU work).
    def shifted(v, d):
        return v if d == 0 else pltpu.roll(v, (-d) % v.shape[-1], 1)

    all_offs = sorted(set(offs_ms) | set(offs_mp) | {-1, 0, 1})
    okm = {d: jnp.logical_and(pos + d >= 0, pos + d < T) for d in all_offs}

    def tap(v, d, fill=0.0):
        return jnp.where(okm[d], shifted(v, d), fill)

    # ---- bottleneck (+ shortcut) 1x1 convs: one stacked MXU matmul ----
    xx = jnp.dot(wx_ref[...].astype(f32), x, preferred_element_type=f32)
    y0 = xx[0:cb, :] + bb_ref[...].astype(f32)          # (Cb, W)
    if shortcut:
        s_pre = xx[cb:cb + cout, :]                     # (Cout, W), bias dropped (BN cancels)
    else:
        s_pre = x                                       # identity shortcut (Cin == Cout)

    # ---- K multi-scale branches: taps stacked on the contraction axis, 1 matmul ----
    for a, d in enumerate(offs_ms):
        ystk_ref[a * cb:(a + 1) * cb, :] = tap(y0, d)
    y_ms = jnp.dot(wms_ref[...].astype(f32), ystk_ref[...],
                   preferred_element_type=f32)          # (K*c_br, W)

    # ---- MaxPool1d(3, stride 1, pad 1) + ConvUnit(kb) branch ----
    neg = -1e30                                          # finite "-inf" (pad never wins max)
    xm = jnp.maximum(jnp.maximum(tap(x, -1, neg), tap(x, 0, neg)), tap(x, 1, neg))
    for a, d in enumerate(offs_mp):
        mstk_ref[a * cin:(a + 1) * cin, :] = tap(xm, d)
    y_mp = jnp.dot(wmp_ref[...].astype(f32), mstk_ref[...],
                   preferred_element_type=f32)          # (c_br, W)

    inv_n = f32(1.0 / n_real)                            # multiply, don't divide

    @pl.when(jnp.logical_and(p == 0, n == 0))
    def _init_stats():
        ysum_ref[...] = jnp.zeros_like(ysum_ref)
        yssq_ref[...] = jnp.zeros_like(yssq_ref)
        if shortcut:
            ssum_ref[...] = jnp.zeros_like(ssum_ref)
            sssq_ref[...] = jnp.zeros_like(sssq_ref)

    @pl.when(p == 0)
    def _accumulate_stats():
        def acc(sum_ref, ssq_ref, r0, v):
            vm = jnp.where(valid, v, 0.0)                # pad columns excluded
            sum_ref[r0:r0 + v.shape[0], :] += jnp.sum(vm, axis=1, keepdims=True)
            ssq_ref[r0:r0 + v.shape[0], :] += jnp.sum(vm * vm, axis=1, keepdims=True)
        acc(ysum_ref, yssq_ref, 0, y_ms)
        acc(ysum_ref, yssq_ref, n_ms_rows, y_mp)
        if shortcut:
            acc(ssum_ref, sssq_ref, 0, s_pre)

    @pl.when(p == 1)
    def _apply_and_store():
        def scale_shift(sum_ref, ssq_ref, g_ref, bt_ref):
            mu = sum_ref[...] * inv_n
            var = ssq_ref[...] * inv_n - mu * mu          # biased (training-mode) variance
            sc = g_ref[...].astype(f32) * jax.lax.rsqrt(var + eps)
            return sc, bt_ref[...].astype(f32) - mu * sc

        sc1, sh1 = scale_shift(ysum_ref, yssq_ref, g1_ref, b1_ref)
        if shortcut:
            sc2, sh2 = scale_shift(ssum_ref, sssq_ref, g2_ref, b2_ref)
            res = s_pre * sc2 + sh2
        else:
            res = s_pre

        def emit(r0, v):
            rows = v.shape[0]
            out = v * sc1[r0:r0 + rows] + sh1[r0:r0 + rows] + res[r0:r0 + rows, :]
            o_ref[r0:r0 + rows, :] = jnp.maximum(out, 0.0).astype(o_ref.dtype)

        emit(0, y_ms)            # K multi-scale branches (channels 0 .. K*c_br)
        emit(n_ms_rows, y_mp)    # maxpool branch (last c_br channels)


# ---------------------------------------------------------------------------
# wrapper
# ---------------------------------------------------------------------------

def _choose_batch_tile(B, T):
    """Batches per lane-tile: tiles must hold whole sequences (taps never cross
    a tile) and be lane dense (multiple of 128).  None -> single padded tile."""
    cands = [b for b in range(1, B + 1) if B % b == 0 and (b * T) % _LANES == 0]
    if not cands:
        return None
    small = [b for b in cands if b * T <= _TILE_TARGET]
    return max(small) if small else min(cands)


def inception_block_forward(x, params, in_channels, out_channels,
                            kernel_sizes, bottleneck_dim):
    B, Cin, T = x.shape
    K = len(kernel_sizes)
    assert out_channels % (K + 1) == 0
    c_br = out_channels // (K + 1)
    Cb = bottleneck_dim
    kb = bottleneck_dim                       # bottleneck_mp ConvUnit kernel size
    Cout = out_channels
    shortcut = in_channels != out_channels
    N = B * T

    # ----- tiling of the flattened batch*time (lane) axis -----
    bpt = _choose_batch_tile(B, T)
    if bpt is None:
        tile = pl.cdiv(N, _LANES) * _LANES    # single, lane-padded tile
        Wtot, nt = tile, 1
    else:
        tile = bpt * T
        Wtot, nt = N, N // (bpt * T)

    # ----- host-side layout plumbing (in a full network the channels-major
    # (C, B*T) layout would be the canonical inter-layer layout and these
    # boundary transposes disappear) -----
    f32 = jnp.float32
    x_cm = jnp.transpose(x, (1, 0, 2)).reshape(Cin, N).astype(f32)
    if Wtot > N:
        x_cm = jnp.pad(x_cm, ((0, 0), (0, Wtot - N)))
    n_idx = jnp.arange(Wtot, dtype=jnp.int32)
    pos = jnp.where(n_idx < N, n_idx % T, jnp.int32(-(2 ** 20))).reshape(1, Wtot)

    col = lambda v: v.reshape(-1, 1).astype(f32)

    # bottleneck (+ shortcut) 1x1 convs stacked into one weight matrix
    wb = params['bottleneck_w'].reshape(Cb, Cin).astype(f32)
    if shortcut:
        wx = jnp.concatenate([wb, params['sc_w'].reshape(Cout, Cin).astype(f32)], 0)
    else:
        wx = wb
    bb = col(params['bottleneck_b'])

    # fused multi-scale weights over the union tap-offset set D
    max_l = max((k - 1) // 2 for k in kernel_sizes)
    max_r = max(k // 2 for k in kernel_sizes)
    offs_ms = tuple(range(-max_l, max_r + 1))
    nD = len(offs_ms)
    wms = jnp.zeros((K * c_br, nD * Cb), f32)
    for i, k in enumerate(kernel_sizes):
        pad_l = (k - 1) // 2
        w_i = params['ms_w'][i].astype(f32)                     # (c_br, Cb, k)
        for j in range(k):
            a = (j - pad_l) + max_l
            wms = wms.at[i * c_br:(i + 1) * c_br, a * Cb:(a + 1) * Cb].set(w_i[:, :, j])

    # fused maxpool-branch conv weights (kernel size kb)
    offs_mp = tuple(range(-((kb - 1) // 2), kb // 2 + 1))
    wmp = jnp.transpose(params['mp_w'].astype(f32), (0, 2, 1)).reshape(c_br, kb * Cin)

    # NOTE: ms_b / mp_b / sc_b are intentionally NOT passed - a per-channel
    # constant is exactly cancelled by training-mode BN mean subtraction.
    inputs = [pos, x_cm, wx, bb, wms, wmp,
              col(params['bn_gamma']), col(params['bn_beta'])]
    if shortcut:
        inputs += [col(params['sc_gamma']), col(params['sc_beta'])]

    def full_spec(a):
        return pl.BlockSpec(a.shape, lambda p, n: (0, 0))

    in_specs = ([pl.BlockSpec((1, tile), lambda p, n: (0, n)),
                 pl.BlockSpec((Cin, tile), lambda p, n: (0, n))]
                + [full_spec(a) for a in inputs[2:]])
    out_specs = pl.BlockSpec((Cout, tile), lambda p, n: (0, n))

    scratch = [pltpu.VMEM((nD * Cb, tile), f32),
               pltpu.VMEM((len(offs_mp) * Cin, tile), f32),
               pltpu.VMEM((Cout, 1), f32),
               pltpu.VMEM((Cout, 1), f32)]
    if shortcut:
        scratch += [pltpu.VMEM((Cout, 1), f32), pltpu.VMEM((Cout, 1), f32)]

    kernel = functools.partial(
        _inception_kernel, T=T, n_real=N, offs_ms=offs_ms, offs_mp=offs_mp,
        cb=Cb, cin=Cin, cout=Cout, n_ms_rows=K * c_br,
        shortcut=shortcut, eps=_BN_EPS)

    # advisory cost estimate (2 passes over the data)
    mm_cols = ((Cb + (Cout if shortcut else 0)) * Cin
               + (K * c_br) * (nD * Cb) + c_br * (len(offs_mp) * Cin))
    cost = pl.CostEstimate(
        flops=int(2 * 2 * Wtot * mm_cols + 20 * Cout * Wtot),
        transcendentals=int(2 * Cout * nt),
        bytes_accessed=int(4 * Wtot * (2 * (Cin + 1) + 2 * Cout)))

    # explicit VMEM budget (64 MiB ceiling keeps v7x happy, plenty of headroom)
    est_bytes = 4 * tile * (2 * (Cin + 1 + Cout)
                            + nD * Cb + len(offs_mp) * Cin
                            + 4 * (Cb + Cin + 3 * Cout))
    vmem_limit = int(min(64 * 1024 * 1024, max(8 * 1024 * 1024, 2 * est_bytes)))

    out_cm = pl.pallas_call(
        kernel,
        grid=(2, nt),                       # (pass, lane-tile); both carry scratch deps
        in_specs=in_specs,
        out_specs=out_specs,
        out_shape=jax.ShapeDtypeStruct((Cout, Wtot), x.dtype),
        scratch_shapes=scratch,
        compiler_params=pltpu.CompilerParams(
            dimension_semantics=("arbitrary", "arbitrary"),
            vmem_limit_bytes=vmem_limit),
        cost_estimate=cost,
    )(*inputs)

    return jnp.transpose(out_cm[:, :N].reshape(Cout, B, T), (1, 0, 2))


# ---------------------------------------------------------------------------
# parameter init (mirrors the PyTorch module's parameters)
# ---------------------------------------------------------------------------

def init_params(key, in_channels, out_channels, kernel_sizes, bottleneck_dim):
    K = len(kernel_sizes)
    assert out_channels % (K + 1) == 0
    c_branch = out_channels // (K + 1)
    counter = [0]

    def nxt(shape, scale=0.2):
        counter[0] += 1
        return scale * jax.random.normal(jax.random.fold_in(key, counter[0]),
                                         shape, jnp.float32)

    p = {
        'bottleneck_w': nxt((bottleneck_dim, in_channels, 1)),
        'bottleneck_b': nxt((bottleneck_dim,)),
        'ms_w': [nxt((c_branch, bottleneck_dim, k)) for k in kernel_sizes],
        'ms_b': [nxt((c_branch,)) for _ in kernel_sizes],
        'mp_w': nxt((c_branch, in_channels, bottleneck_dim)),
        'mp_b': nxt((c_branch,)),
        'bn_gamma': 1.0 + nxt((out_channels,), 0.3),
        'bn_beta': nxt((out_channels,), 0.1),
    }
    if in_channels != out_channels:
        p['sc_w'] = nxt((out_channels, in_channels, 1))
        p['sc_b'] = nxt((out_channels,))
        p['sc_gamma'] = 1.0 + nxt((out_channels,), 0.3)
        p['sc_beta'] = nxt((out_channels,), 0.1)
    return p


# ---------------------------------------------------------------------------
# pure-JAX reference (faithful to the PyTorch forward, training-mode BN)
# ---------------------------------------------------------------------------

def _ref_conv1d(x, w, b, padl, padr):
    xp = jnp.pad(x, ((0, 0), (0, 0), (padl, padr)))
    y = jax.lax.conv_general_dilated(xp, w, window_strides=(1,), padding='VALID',
                                     dimension_numbers=('NCH', 'OIH', 'NCH'))
    return y + b[None, :, None]


def _ref_bn(x, g, b, eps=_BN_EPS):
    mu = jnp.mean(x, axis=(0, 2), keepdims=True)
    var = jnp.mean((x - mu) ** 2, axis=(0, 2), keepdims=True)
    return (x - mu) / jnp.sqrt(var + eps) * g[None, :, None] + b[None, :, None]


def ref_forward(x, params, in_channels, out_channels, kernel_sizes, bottleneck_dim):
    y = _ref_conv1d(x, params['bottleneck_w'], params['bottleneck_b'], 0, 0)
    branches = [_ref_conv1d(y, params['ms_w'][i], params['ms_b'][i],
                            (k - 1) // 2, k // 2)
                for i, k in enumerate(kernel_sizes)]
    xp = jnp.pad(x, ((0, 0), (0, 0), (1, 1)), constant_values=-jnp.inf)
    xm = jnp.maximum(jnp.maximum(xp[:, :, :-2], xp[:, :, 1:-1]), xp[:, :, 2:])
    branches.append(_ref_conv1d(xm, params['mp_w'], params['mp_b'],
                                (bottleneck_dim - 1) // 2, bottleneck_dim // 2))
    y_bn = _ref_bn(jnp.concatenate(branches, axis=1),
                   params['bn_gamma'], params['bn_beta'])
    if in_channels != out_channels:
        s = _ref_bn(_ref_conv1d(x, params['sc_w'], params['sc_b'], 0, 0),
                    params['sc_gamma'], params['sc_beta'])
    else:
        s = x
    return jnp.maximum(y_bn + s, 0.0)


# ---------------------------------------------------------------------------
# main
# ---------------------------------------------------------------------------

if __name__ == "__main__":
    key = jax.random.PRNGKey(0)

    def run_case(case_id, B, Cin, T, Cout, ks, Cb):
        k = jax.random.fold_in(key, case_id)
        params = init_params(k, Cin, Cout, ks, Cb)
        x = jax.random.normal(jax.random.fold_in(k, 999), (B, Cin, T), jnp.float32)
        fwd = jax.jit(functools.partial(
            inception_block_forward, in_channels=Cin, out_channels=Cout,
            kernel_sizes=ks, bottleneck_dim=Cb))
        out = jax.block_until_ready(fwd(x, params))
        ref = ref_forward(x, params, Cin, Cout, ks, Cb)
        assert out.shape == (B, Cout, T), out.shape
        max_err = float(jnp.max(jnp.abs(out - ref)))
        assert jnp.allclose(out, ref, atol=2e-4, rtol=2e-4), \
            f"case {case_id} max_err={max_err}"

    # case 1: conv shortcut path, single lane-padded tile (B*T = 32 -> 128 lanes)
    run_case(1, B=2, Cin=4, T=16, Cout=8, ks=[3, 5, 7], Cb=4)
    # case 2: identity shortcut, pipelined 2-tile grid (B*T = 1024 -> 2 x 512 lanes)
    run_case(2, B=8, Cin=8, T=128, Cout=8, ks=[3, 5, 7], Cb=4)

    print("KERNEL_OK")
</pallas_src>

<mosaic_0001>
module attributes {stable_mosaic.version = 11 : i64} {
  func.func @_inception_kernel(%arg0: i32, %arg1: i32, %arg2: memref<1x128xi32, #tpu.memory_space<vmem>>, %arg3: memref<4x128xf32, #tpu.memory_space<vmem>>, %arg4: memref<12x4xf32, #tpu.memory_space<vmem>>, %arg5: memref<4x1xf32, #tpu.memory_space<vmem>>, %arg6: memref<6x28xf32, #tpu.memory_space<vmem>>, %arg7: memref<2x16xf32, #tpu.memory_space<vmem>>, %arg8: memref<8x1xf32, #tpu.memory_space<vmem>>, %arg9: memref<8x1xf32, #tpu.memory_space<vmem>>, %arg10: memref<8x1xf32, #tpu.memory_space<vmem>>, %arg11: memref<8x1xf32, #tpu.memory_space<vmem>>, %arg12: memref<8x128xf32, #tpu.memory_space<vmem>>, %arg13: memref<28x128xf32, #tpu.memory_space<vmem>>, %arg14: memref<16x128xf32, #tpu.memory_space<vmem>>, %arg15: memref<8x1xf32, #tpu.memory_space<vmem>>, %arg16: memref<8x1xf32, #tpu.memory_space<vmem>>, %arg17: memref<8x1xf32, #tpu.memory_space<vmem>>, %arg18: memref<8x1xf32, #tpu.memory_space<vmem>>) attributes {dimension_semantics = [#tpu.dimension_semantics<arbitrary>, #tpu.dimension_semantics<arbitrary>], iteration_bounds = array<i64: 2, 1>, scalar_prefetch = 0 : i64, scratch_operands = 6 : i64, tpu.core_type = #tpu.core_type<tc>, window_params = [{transform_indices = @transform_0, window_bounds = array<i64: 1, 128>}, {transform_indices = @transform_1, window_bounds = array<i64: 4, 128>}, {pipeline_mode = #tpu.pipeline_mode<synchronous>, transform_indices = @transform_2, window_bounds = array<i64: 12, 4>}, {pipeline_mode = #tpu.pipeline_mode<synchronous>, transform_indices = @transform_3, window_bounds = array<i64: 4, 1>}, {pipeline_mode = #tpu.pipeline_mode<synchronous>, transform_indices = @transform_4, window_bounds = array<i64: 6, 28>}, {pipeline_mode = #tpu.pipeline_mode<synchronous>, transform_indices = @transform_5, window_bounds = array<i64: 2, 16>}, {pipeline_mode = #tpu.pipeline_mode<synchronous>, transform_indices = @transform_6, window_bounds = array<i64: 8, 1>}, {pipeline_mode = #tpu.pipeline_mode<synchronous>, transform_indices = @transform_7, window_bounds = array<i64: 8, 1>}, {pipeline_mode = #tpu.pipeline_mode<synchronous>, transform_indices = @transform_8, window_bounds = array<i64: 8, 1>}, {pipeline_mode = #tpu.pipeline_mode<synchronous>, transform_indices = @transform_9, window_bounds = array<i64: 8, 1>}, {transform_indices = @transform_10, window_bounds = array<i64: 8, 128>}]} {
    %c0 = arith.constant 0 : index
    %c0_0 = arith.constant 0 : index
    %0 = vector.load %arg2[%c0, %c0_0] : memref<1x128xi32, #tpu.memory_space<vmem>>, vector<1x128xi32>
    %c0_i32 = arith.constant 0 : i32
    %1 = vector.broadcast %c0_i32 : i32 to vector<1x128xi32>
    %2 = arith.cmpi sge, %0, %1 : vector<1x128xi32>
    %c0_1 = arith.constant 0 : index
    %c0_2 = arith.constant 0 : index
    %3 = vector.load %arg3[%c0_1, %c0_2] : memref<4x128xf32, #tpu.memory_space<vmem>>, vector<4x128xf32>
    %c-3_i32 = arith.constant -3 : i32
    %4 = vector.broadcast %c-3_i32 : i32 to vector<1x128xi32>
    %5 = arith.addi %0, %4 : vector<1x128xi32>
    %c0_i32_3 = arith.constant 0 : i32
    %6 = vector.broadcast %c0_i32_3 : i32 to vector<1x128xi32>
    %7 = arith.cmpi sge, %5, %6 : vector<1x128xi32>
    %c-3_i32_4 = arith.constant -3 : i32
    %8 = vector.broadcast %c-3_i32_4 : i32 to vector<1x128xi32>
    %9 = arith.addi %0, %8 : vector<1x128xi32>
    %c16_i32 = arith.constant 16 : i32
    %10 = vector.broadcast %c16_i32 : i32 to vector<1x128xi32>
    %11 = arith.cmpi slt, %9, %10 : vector<1x128xi32>
    %12 = arith.andi %7, %11 : vector<1x128xi1>
    %c-2_i32 = arith.constant -2 : i32
    %13 = vector.broadcast %c-2_i32 : i32 to vector<1x128xi32>
    %14 = arith.addi %0, %13 : vector<1x128xi32>
    %c0_i32_5 = arith.constant 0 : i32
    %15 = vector.broadcast %c0_i32_5 : i32 to vector<1x128xi32>
    %16 = arith.cmpi sge, %14, %15 : vector<1x128xi32>
    %c-2_i32_6 = arith.constant -2 : i32
    %17 = vector.broadcast %c-2_i32_6 : i32 to vector<1x128xi32>
    %18 = arith.addi %0, %17 : vector<1x128xi32>
    %c16_i32_7 = arith.constant 16 : i32
    %19 = vector.broadcast %c16_i32_7 : i32 to vector<1x128xi32>
    %20 = arith.cmpi slt, %18, %19 : vector<1x128xi32>
    %21 = arith.andi %16, %20 : vector<1x128xi1>
    %c-1_i32 = arith.constant -1 : i32
    %22 = vector.broadcast %c-1_i32 : i32 to vector<1x128xi32>
    %23 = arith.addi %0, %22 : vector<1x128xi32>
    %c0_i32_8 = arith.constant 0 : i32
    %24 = vector.broadcast %c0_i32_8 : i32 to vector<1x128xi32>
    %25 = arith.cmpi sge, %23, %24 : vector<1x128xi32>
    %c-1_i32_9 = arith.constant -1 : i32
    %26 = vector.broadcast %c-1_i32_9 : i32 to vector<1x128xi32>
    %27 = arith.addi %0, %26 : vector<1x128xi32>
    %c16_i32_10 = arith.constant 16 : i32
    %28 = vector.broadcast %c16_i32_10 : i32 to vector<1x128xi32>
    %29 = arith.cmpi slt, %27, %28 : vector<1x128xi32>
    %30 = arith.andi %25, %29 : vector<1x128xi1>
    %c0_i32_11 = arith.constant 0 : i32
    %31 = vector.broadcast %c0_i32_11 : i32 to vector<1x128xi32>
    %32 = arith.addi %0, %31 : vector<1x128xi32>
    %c0_i32_12 = arith.constant 0 : i32
    %33 = vector.broadcast %c0_i32_12 : i32 to vector<1x128xi32>
    %34 = arith.cmpi sge, %32, %33 : vector<1x128xi32>
    %c0_i32_13 = arith.constant 0 : i32
    %35 = vector.broadcast %c0_i32_13 : i32 to vector<1x128xi32>
    %36 = arith.addi %0, %35 : vector<1x128xi32>
    %c16_i32_14 = arith.constant 16 : i32
    %37 = vector.broadcast %c16_i32_14 : i32 to vector<1x128xi32>
    %38 = arith.cmpi slt, %36, %37 : vector<1x128xi32>
    %39 = arith.andi %34, %38 : vector<1x128xi1>
    %c1_i32 = arith.constant 1 : i32
    %40 = vector.broadcast %c1_i32 : i32 to vector<1x128xi32>
    %41 = arith.addi %0, %40 : vector<1x128xi32>
    %c0_i32_15 = arith.constant 0 : i32
    %42 = vector.broadcast %c0_i32_15 : i32 to vector<1x128xi32>
    %43 = arith.cmpi sge, %41, %42 : vector<1x128xi32>
    %c1_i32_16 = arith.constant 1 : i32
    %44 = vector.broadcast %c1_i32_16 : i32 to vector<1x128xi32>
    %45 = arith.addi %0, %44 : vector<1x128xi32>
    %c16_i32_17 = arith.constant 16 : i32
    %46 = vector.broadcast %c16_i32_17 : i32 to vector<1x128xi32>
    %47 = arith.cmpi slt, %45, %46 : vector<1x128xi32>
    %48 = arith.andi %43, %47 : vector<1x128xi1>
    %c2_i32 = arith.constant 2 : i32
    %49 = vector.broadcast %c2_i32 : i32 to vector<1x128xi32>
    %50 = arith.addi %0, %49 : vector<1x128xi32>
    %c0_i32_18 = arith.constant 0 : i32
    %51 = vector.broadcast %c0_i32_18 : i32 to vector<1x128xi32>
    %52 = arith.cmpi sge, %50, %51 : vector<1x128xi32>
    %c2_i32_19 = arith.constant 2 : i32
    %53 = vector.broadcast %c2_i32_19 : i32 to vector<1x128xi32>
    %54 = arith.addi %0, %53 : vector<1x128xi32>
    %c16_i32_20 = arith.constant 16 : i32
    %55 = vector.broadcast %c16_i32_20 : i32 to vector<1x128xi32>
    %56 = arith.cmpi slt, %54, %55 : vector<1x128xi32>
    %57 = arith.andi %52, %56 : vector<1x128xi1>
    %c3_i32 = arith.constant 3 : i32
    %58 = vector.broadcast %c3_i32 : i32 to vector<1x128xi32>
    %59 = arith.addi %0, %58 : vector<1x128xi32>
    %c0_i32_21 = arith.constant 0 : i32
    %60 = vector.broadcast %c0_i32_21 : i32 to vector<1x128xi32>
    %61 = arith.cmpi sge, %59, %60 : vector<1x128xi32>
    %c3_i32_22 = arith.constant 3 : i32
    %62 = vector.broadcast %c3_i32_22 : i32 to vector<1x128xi32>
    %63 = arith.addi %0, %62 : vector<1x128xi32>
    %c16_i32_23 = arith.constant 16 : i32
    %64 = vector.broadcast %c16_i32_23 : i32 to vector<1x128xi32>
    %65 = arith.cmpi slt, %63, %64 : vector<1x128xi32>
    %66 = arith.andi %61, %65 : vector<1x128xi1>
    %c0_24 = arith.constant 0 : index
    %c0_25 = arith.constant 0 : index
    %67 = vector.load %arg4[%c0_24, %c0_25] : memref<12x4xf32, #tpu.memory_space<vmem>>, vector<12x4xf32>
    %cst = arith.constant dense<0.000000e+00> : vector<12x128xf32>
    %68 = tpu.matmul %67, %3, %cst {dimension_numbers = #tpu.dot_dimension_numbers<[1], [0], [0], [1], [0, 0, 1, 1], [], []>} : vector<12x4xf32>, vector<4x128xf32>, vector<12x128xf32> -> vector<12x128xf32>
    %69 = vector.extract_strided_slice %68 {offsets = [0, 0], sizes = [4, 128], strides = [1, 1]} : vector<12x128xf32> to vector<4x128xf32>
    %c0_26 = arith.constant 0 : index
    %c0_27 = arith.constant 0 : index
    %70 = vector.load %arg5[%c0_26, %c0_27] : memref<4x1xf32, #tpu.memory_space<vmem>>, vector<4x1xf32>
    %71 = vector.broadcast %70 : vector<4x1xf32> to vector<4x128xf32>
    %72 = arith.addf %69, %71 : vector<4x128xf32>
    %73 = vector.extract_strided_slice %68 {offsets = [4, 0], sizes = [8, 128], strides = [1, 1]} : vector<12x128xf32> to vector<8x128xf32>
    %c3_i32_28 = arith.constant 3 : i32
    %74 = tpu.dynamic_rotate %72 by %c3_i32_28 dim 1 : vector<4x128xf32>, i32 -> vector<4x128xf32>
    %cst_29 = arith.constant 0.000000e+00 : f32
    %75 = vector.shape_cast %12 : vector<1x128xi1> to vector<1x128xi1>
    %76 = vector.broadcast %75 : vector<1x128xi1> to vector<4x128xi1>
    %77 = vector.broadcast %cst_29 : f32 to vector<4x128xf32>
    %78 = arith.select %76, %74, %77 : vector<4x128xi1>, vector<4x128xf32>
    %c0_30 = arith.constant 0 : index
    %c0_31 = arith.constant 0 : index
    %79 = vector.load %arg13[%c0_30, %c0_31] : memref<28x128xf32, #tpu.memory_space<vmem>>, vector<4x128xf32>
    tpu.vector_store %arg13[%c0_30, %c0_31], %78 {strides = array<i32>} : memref<28x128xf32, #tpu.memory_space<vmem>>, vector<4x128xf32>,
    %c2_i32_32 = arith.constant 2 : i32
    %80 = tpu.dynamic_rotate %72 by %c2_i32_32 dim 1 : vector<4x128xf32>, i32 -> vector<4x128xf32>
    %cst_33 = arith.constant 0.000000e+00 : f32
    %81 = vector.shape_cast %21 : vector<1x128xi1> to vector<1x128xi1>
    %82 = vector.broadcast %81 : vector<1x128xi1> to vector<4x128xi1>
    %83 = vector.broadcast %cst_33 : f32 to vector<4x128xf32>
    %84 = arith.select %82, %80, %83 : vector<4x128xi1>, vector<4x128xf32>
    %c4 = arith.constant 4 : index
    %c0_34 = arith.constant 0 : index
    %85 = vector.load %arg13[%c4, %c0_34] : memref<28x128xf32, #tpu.memory_space<vmem>>, vector<4x128xf32>
    tpu.vector_store %arg13[%c4, %c0_34], %84 {strides = array<i32>} : memref<28x128xf32, #tpu.memory_space<vmem>>, vector<4x128xf32>,
    %c1_i32_35 = arith.constant 1 : i32
    %86 = tpu.dynamic_rotate %72 by %c1_i32_35 dim 1 : vector<4x128xf32>, i32 -> vector<4x128xf32>
    %cst_36 = arith.constant 0.000000e+00 : f32
    %87 = vector.shape_cast %30 : vector<1x128xi1> to vector<1x128xi1>
    %88 = vector.broadcast %87 : vector<1x128xi1> to vector<4x128xi1>
    %89 = vector.broadcast %cst_36 : f32 to vector<4x128xf32>
    %90 = arith.select %88, %86, %89 : vector<4x128xi1>, vector<4x128xf32>
    %c8 = arith.constant 8 : index
    %c0_37 = arith.constant 0 : index
    %91 = vector.load %arg13[%c8, %c0_37] : memref<28x128xf32, #tpu.memory_space<vmem>>, vector<4x128xf32>
    tpu.vector_store %arg13[%c8, %c0_37], %90 {strides = array<i32>} : memref<28x128xf32, #tpu.memory_space<vmem>>, vector<4x128xf32>,
    %cst_38 = arith.constant 0.000000e+00 : f32
    %92 = vector.shape_cast %39 : vector<1x128xi1> to vector<1x128xi1>
    %93 = vector.broadcast %92 : vector<1x128xi1> to vector<4x128xi1>
    %94 = vector.broadcast %cst_38 : f32 to vector<4x128xf32>
    %95 = arith.select %93, %72, %94 : vector<4x128xi1>, vector<4x128xf32>
    %c12 = arith.constant 12 : index
    %c0_39 = arith.constant 0 : index
    %96 = vector.load %arg13[%c12, %c0_39] : memref<28x128xf32, #tpu.memory_space<vmem>>, vector<4x128xf32>
    tpu.vector_store %arg13[%c12, %c0_39], %95 {strides = array<i32>} : memref<28x128xf32, #tpu.memory_space<vmem>>, vector<4x128xf32>,
    %c127_i32 = arith.constant 127 : i32
    %97 = tpu.dynamic_rotate %72 by %c127_i32 dim 1 : vector<4x128xf32>, i32 -> vector<4x128xf32>
    %cst_40 = arith.constant 0.000000e+00 : f32
    %98 = vector.shape_cast %48 : vector<1x128xi1> to vector<1x128xi1>
    %99 = vector.broadcast %98 : vector<1x128xi1> to vector<4x128xi1>
    %100 = vector.broadcast %cst_40 : f32 to vector<4x128xf32>
    %101 = arith.select %99, %97, %100 : vector<4x128xi1>, vector<4x128xf32>
    %c16 = arith.constant 16 : index
    %c0_41 = arith.constant 0 : index
    %102 = vector.load %arg13[%c16, %c0_41] : memref<28x128xf32, #tpu.memory_space<vmem>>, vector<4x128xf32>
    tpu.vector_store %arg13[%c16, %c0_41], %101 {strides = array<i32>} : memref<28x128xf32, #tpu.memory_space<vmem>>, vector<4x128xf32>,
    %c126_i32 = arith.constant 126 : i32
    %103 = tpu.dynamic_rotate %72 by %c126_i32 dim 1 : vector<4x128xf32>, i32 -> vector<4x128xf32>
    %cst_42 = arith.constant 0.000000e+00 : f32
    %104 = vector.shape_cast %57 : vector<1x128xi1> to vector<1x128xi1>
    %105 = vector.broadcast %104 : vector<1x128xi1> to vector<4x128xi1>
    %106 = vector.broadcast %cst_42 : f32 to vector<4x128xf32>
    %107 = arith.select %105, %103, %106 : vector<4x128xi1>, vector<4x128xf32>
    %c20 = arith.constant 20 : index
    %c0_43 = arith.constant 0 : index
    %108 = vector.load %arg13[%c20, %c0_43] : memref<28x128xf32, #tpu.memory_space<vmem>>, vector<4x128xf32>
    tpu.vector_store %arg13[%c20, %c0_43], %107 {strides = array<i32>} : memref<28x128xf32, #tpu.memory_space<vmem>>, vector<4x128xf32>,
    %c125_i32 = arith.constant 125 : i32
    %109 = tpu.dynamic_rotate %72 by %c125_i32 dim 1 : vector<4x128xf32>, i32 -> vector<4x128xf32>
    %cst_44 = arith.constant 0.000000e+00 : f32
    %110 = vector.shape_cast %66 : vector<1x128xi1> to vector<1x128xi1>
    %111 = vector.broadcast %110 : vector<1x128xi1> to vector<4x128xi1>
    %112 = vector.broadcast %cst_44 : f32 to vector<4x128xf32>
    %113 = arith.select %111, %109, %112 : vector<4x128xi1>, vector<4x128xf32>
    %c24 = arith.constant 24 : index
    %c0_45 = arith.constant 0 : index
    %114 = vector.load %arg13[%c24, %c0_45] : memref<28x128xf32, #tpu.memory_space<vmem>>, vector<4x128xf32>
    tpu.vector_store %arg13[%c24, %c0_45], %113 {strides = array<i32>} : memref<28x128xf32, #tpu.memory_space<vmem>>, vector<4x128xf32>,
    %c0_46 = arith.constant 0 : index
    %c0_47 = arith.constant 0 : index
    %115 = vector.load %arg6[%c0_46, %c0_47] : memref<6x28xf32, #tpu.memory_space<vmem>>, vector<6x28xf32>
    %c0_48 = arith.constant 0 : index
    %c0_49 = arith.constant 0 : index
    %116 = vector.load %arg13[%c0_48, %c0_49] : memref<28x128xf32, #tpu.memory_space<vmem>>, vector<28x128xf32>
    %cst_50 = arith.constant dense<0.000000e+00> : vector<6x128xf32>
    %117 = tpu.matmul %115, %116, %cst_50 {dimension_numbers = #tpu.dot_dimension_numbers<[1], [0], [0], [1], [0, 0, 1, 1], [], []>} : vector<6x28xf32>, vector<28x128xf32>, vector<6x128xf32> -> vector<6x128xf32>
    %c1_i32_51 = arith.constant 1 : i32
    %118 = tpu.dynamic_rotate %3 by %c1_i32_51 dim 1 : vector<4x128xf32>, i32 -> vector<4x128xf32>
    %cst_52 = arith.constant -1.000000e+30 : f32
    %119 = vector.shape_cast %30 : vector<1x128xi1> to vector<1x128xi1>
    %120 = vector.broadcast %119 : vector<1x128xi1> to vector<4x128xi1>
    %121 = vector.broadcast %cst_52 : f32 to vector<4x128xf32>
    %122 = arith.select %120, %118, %121 : vector<4x128xi1>, vector<4x128xf32>
    %cst_53 = arith.constant -1.000000e+30 : f32
    %123 = vector.shape_cast %39 : vector<1x128xi1> to vector<1x128xi1>
    %124 = vector.broadcast %123 : vector<1x128xi1> to vector<4x128xi1>
    %125 = vector.broadcast %cst_53 : f32 to vector<4x128xf32>
    %126 = arith.select %124, %3, %125 : vector<4x128xi1>, vector<4x128xf32>
    %127 = arith.maximumf %122, %126 : vector<4x128xf32>
    %c127_i32_54 = arith.constant 127 : i32
    %128 = tpu.dynamic_rotate %3 by %c127_i32_54 dim 1 : vector<4x128xf32>, i32 -> vector<4x128xf32>
    %cst_55 = arith.constant -1.000000e+30 : f32
    %129 = vector.shape_cast %48 : vector<1x128xi1> to vector<1x128xi1>
    %130 = vector.broadcast %129 : vector<1x128xi1> to vector<4x128xi1>
    %131 = vector.broadcast %cst_55 : f32 to vector<4x128xf32>
    %132 = arith.select %130, %128, %131 : vector<4x128xi1>, vector<4x128xf32>
    %133 = arith.maximumf %127, %132 : vector<4x128xf32>
    %c1_i32_56 = arith.constant 1 : i32
    %134 = tpu.dynamic_rotate %133 by %c1_i32_56 dim 1 : vector<4x128xf32>, i32 -> vector<4x128xf32>
    %cst_57 = arith.constant 0.000000e+00 : f32
    %135 = vector.shape_cast %30 : vector<1x128xi1> to vector<1x128xi1>
    %136 = vector.broadcast %135 : vector<1x128xi1> to vector<4x128xi1>
    %137 = vector.broadcast %cst_57 : f32 to vector<4x128xf32>
    %138 = arith.select %136, %134, %137 : vector<4x128xi1>, vector<4x128xf32>
    %c0_58 = arith.constant 0 : index
    %c0_59 = arith.constant 0 : index
    %139 = vector.load %arg14[%c0_58, %c0_59] : memref<16x128xf32, #tpu.memory_space<vmem>>, vector<4x128xf32>
    tpu.vector_store %arg14[%c0_58, %c0_59], %138 {strides = array<i32>} : memref<16x128xf32, #tpu.memory_space<vmem>>, vector<4x128xf32>,
    %cst_60 = arith.constant 0.000000e+00 : f32
    %140 = vector.shape_cast %39 : vector<1x128xi1> to vector<1x128xi1>
    %141 = vector.broadcast %140 : vector<1x128xi1> to vector<4x128xi1>
    %142 = vector.broadcast %cst_60 : f32 to vector<4x128xf32>
    %143 = arith.select %141, %133, %142 : vector<4x128xi1>, vector<4x128xf32>
    %c4_61 = arith.constant 4 : index
    %c0_62 = arith.constant 0 : index
    %144 = vector.load %arg14[%c4_61, %c0_62] : memref<16x128xf32, #tpu.memory_space<vmem>>, vector<4x128xf32>
    tpu.vector_store %arg14[%c4_61, %c0_62], %143 {strides = array<i32>} : memref<16x128xf32, #tpu.memory_space<vmem>>, vector<4x128xf32>,
    %c127_i32_63 = arith.constant 127 : i32
    %145 = tpu.dynamic_rotate %133 by %c127_i32_63 dim 1 : vector<4x128xf32>, i32 -> vector<4x128xf32>
    %cst_64 = arith.constant 0.000000e+00 : f32
    %146 = vector.shape_cast %48 : vector<1x128xi1> to vector<1x128xi1>
    %147 = vector.broadcast %146 : vector<1x128xi1> to vector<4x128xi1>
    %148 = vector.broadcast %cst_64 : f32 to vector<4x128xf32>
    %149 = arith.select %147, %145, %148 : vector<4x128xi1>, vector<4x128xf32>
    %c8_65 = arith.constant 8 : index
    %c0_66 = arith.constant 0 : index
    %150 = vector.load %arg14[%c8_65, %c0_66] : memref<16x128xf32, #tpu.memory_space<vmem>>, vector<4x128xf32>
    tpu.vector_store %arg14[%c8_65, %c0_66], %149 {strides = array<i32>} : memref<16x128xf32, #tpu.memory_space<vmem>>, vector<4x128xf32>,
    %c126_i32_67 = arith.constant 126 : i32
    %151 = tpu.dynamic_rotate %133 by %c126_i32_67 dim 1 : vector<4x128xf32>, i32 -> vector<4x128xf32>
    %cst_68 = arith.constant 0.000000e+00 : f32
    %152 = vector.shape_cast %57 : vector<1x128xi1> to vector<1x128xi1>
    %153 = vector.broadcast %152 : vector<1x128xi1> to vector<4x128xi1>
    %154 = vector.broadcast %cst_68 : f32 to vector<4x128xf32>
    %155 = arith.select %153, %151, %154 : vector<4x128xi1>, vector<4x128xf32>
    %c12_69 = arith.constant 12 : index
    %c0_70 = arith.constant 0 : index
    %156 = vector.load %arg14[%c12_69, %c0_70] : memref<16x128xf32, #tpu.memory_space<vmem>>, vector<4x128xf32>
    tpu.vector_store %arg14[%c12_69, %c0_70], %155 {strides = array<i32>} : memref<16x128xf32, #tpu.memory_space<vmem>>, vector<4x128xf32>,
    %c0_71 = arith.constant 0 : index
    %c0_72 = arith.constant 0 : index
    %157 = vector.load %arg7[%c0_71, %c0_72] : memref<2x16xf32, #tpu.memory_space<vmem>>, vector<2x16xf32>
    %c0_73 = arith.constant 0 : index
    %c0_74 = arith.constant 0 : index
    %158 = vector.load %arg14[%c0_73, %c0_74] : memref<16x128xf32, #tpu.memory_space<vmem>>, vector<16x128xf32>
    %cst_75 = arith.constant dense<0.000000e+00> : vector<2x128xf32>
    %159 = tpu.matmul %157, %158, %cst_75 {dimension_numbers = #tpu.dot_dimension_numbers<[1], [0], [0], [1], [0, 0, 1, 1], [], []>} : vector<2x16xf32>, vector<16x128xf32>, vector<2x128xf32> -> vector<2x128xf32>
    %c0_i32_76 = arith.constant 0 : i32
    %160 = arith.cmpi eq, %arg0, %c0_i32_76 : i32
    %c0_i32_77 = arith.constant 0 : i32
    %161 = arith.cmpi eq, %arg1, %c0_i32_77 : i32
    %162 = arith.andi %160, %161 : i1
    %163 = arith.extui %162 : i1 to i32
    %c0_i32_78 = arith.constant 0 : i32
    %164 = arith.cmpi ne, %163, %c0_i32_78 : i32
    scf.if %164 {
      %cst_84 = arith.constant 0.000000e+00 : f32
      %171 = vector.broadcast %cst_84 : f32 to vector<8x1xf32>
      %c0_85 = arith.constant 0 : index
      %c0_86 = arith.constant 0 : index
      %172 = vector.load %arg15[%c0_85, %c0_86] : memref<8x1xf32, #tpu.memory_space<vmem>>, vector<8x1xf32>
      tpu.vector_store %arg15[%c0_85, %c0_86], %171 {strides = array<i32>} : memref<8x1xf32, #tpu.memory_space<vmem>>, vector<8x1xf32>,
      %cst_87 = arith.constant 0.000000e+00 : f32
      %173 = vector.broadcast %cst_87 : f32 to vector<8x1xf32>
      %c0_88 = arith.constant 0 : index
      %c0_89 = arith.constant 0 : index
      %174 = vector.load %arg16[%c0_88, %c0_89] : memref<8x1xf32, #tpu.memory_space<vmem>>, vector<8x1xf32>
      tpu.vector_store %arg16[%c0_88, %c0_89], %173 {strides = array<i32>} : memref<8x1xf32, #tpu.memory_space<vmem>>, vector<8x1xf32>,
      %cst_90 = arith.constant 0.000000e+00 : f32
      %175 = vector.broadcast %cst_90 : f32 to vector<8x1xf32>
      %c0_91 = arith.constant 0 : index
      %c0_92 = arith.constant 0 : index
      %176 = vector.load %arg17[%c0_91, %c0_92] : memref<8x1xf32, #tpu.memory_space<vmem>>, vector<8x1xf32>
      tpu.vector_store %arg17[%c0_91, %c0_92], %175 {strides = array<i32>} : memref<8x1xf32, #tpu.memory_space<vmem>>, vector<8x1xf32>,
      %cst_93 = arith.constant 0.000000e+00 : f32
      %177 = vector.broadcast %cst_93 : f32 to vector<8x1xf32>
      %c0_94 = arith.constant 0 : index
      %c0_95 = arith.constant 0 : index
      %178 = vector.load %arg18[%c0_94, %c0_95] : memref<8x1xf32, #tpu.memory_space<vmem>>, vector<8x1xf32>
      tpu.vector_store %arg18[%c0_94, %c0_95], %177 {strides = array<i32>} : memref<8x1xf32, #tpu.memory_space<vmem>>, vector<8x1xf32>,
    } else {
    }
    %c0_i32_79 = arith.constant 0 : i32
    %165 = arith.cmpi eq, %arg0, %c0_i32_79 : i32
    %166 = arith.extui %165 : i1 to i32
    %c0_i32_80 = arith.constant 0 : i32
    %167 = arith.cmpi ne, %166, %c0_i32_80 : i32
    scf.if %167 {
      %cst_84 = arith.constant 0.000000e+00 : f32
      %171 = vector.shape_cast %2 : vector<1x128xi1> to vector<1x128xi1>
      %172 = vector.broadcast %171 : vector<1x128xi1> to vector<6x128xi1>
      %173 = vector.broadcast %cst_84 : f32 to vector<6x128xf32>
      %174 = arith.select %172, %117, %173 : vector<6x128xi1>, vector<6x128xf32>
      %c0_85 = arith.constant 0 : index
      %c0_86 = arith.constant 0 : index
      %175 = vector.load %arg15[%c0_85, %c0_86] : memref<8x1xf32, #tpu.memory_space<vmem>>, vector<6x1xf32>
      %cst_87 = arith.constant dense<0.000000e+00> : vector<6xf32>
      %176 = vector.multi_reduction <add>, %174, %cst_87 [1] : vector<6x128xf32> to vector<6xf32>
      %177 = vector.shape_cast %176 : vector<6xf32> to vector<6x1xf32>
      %178 = arith.addf %175, %177 : vector<6x1xf32>
      %c0_88 = arith.constant 0 : index
      %c0_89 = arith.constant 0 : index
      %179 = vector.load %arg15[%c0_88, %c0_89] : memref<8x1xf32, #tpu.memory_space<vmem>>, vector<6x1xf32>
      tpu.vector_store %arg15[%c0_88, %c0_89], %178 {strides = array<i32>} : memref<8x1xf32, #tpu.memory_space<vmem>>, vector<6x1xf32>,
      %c0_90 = arith.constant 0 : index
      %c0_91 = arith.constant 0 : index
      %180 = vector.load %arg16[%c0_90, %c0_91] : memref<8x1xf32, #tpu.memory_space<vmem>>, vector<6x1xf32>
      %181 = arith.mulf %174, %174 : vector<6x128xf32>
      %cst_92 = arith.constant dense<0.000000e+00> : vector<6xf32>
      %182 = vector.multi_reduction <add>, %181, %cst_92 [1] : vector<6x128xf32> to vector<6xf32>
      %183 = vector.shape_cast %182 : vector<6xf32> to vector<6x1xf32>
      %184 = arith.addf %180, %183 : vector<6x1xf32>
      %c0_93 = arith.constant 0 : index
      %c0_94 = arith.constant 0 : index
      %185 = vector.load %arg16[%c0_93, %c0_94] : memref<8x1xf32, #tpu.memory_space<vmem>>, vector<6x1xf32>
      tpu.vector_store %arg16[%c0_93, %c0_94], %184 {strides = array<i32>} : memref<8x1xf32, #tpu.memory_space<vmem>>, vector<6x1xf32>,
      %cst_95 = arith.constant 0.000000e+00 : f32
      %186 = vector.shape_cast %2 : vector<1x128xi1> to vector<1x128xi1>
      %187 = vector.broadcast %186 : vector<1x128xi1> to vector<2x128xi1>
      %188 = vector.broadcast %cst_95 : f32 to vector<2x128xf32>
      %189 = arith.select %187, %159, %188 : vector<2x128xi1>, vector<2x128xf32>
      %c6 = arith.constant 6 : index
      %c0_96 = arith.constant 0 : index
      %190 = vector.load %arg15[%c6, %c0_96] : memref<8x1xf32, #tpu.memory_space<vmem>>, vector<2x1xf32>
      %cst_97 = arith.constant dense<0.000000e+00> : vector<2xf32>
      %191 = vector.multi_reduction <add>, %189, %cst_97 [1] : vector<2x128xf32> to vector<2xf32>
      %192 = vector.shape_cast %191 : vector<2xf32> to vector<2x1xf32>
      %193 = arith.addf %190, %192 : vector<2x1xf32>
      %c6_98 = arith.constant 6 : index
      %c0_99 = arith.constant 0 : index
      %194 = vector.load %arg15[%c6_98, %c0_99] : memref<8x1xf32, #tpu.memory_space<vmem>>, vector<2x1xf32>
      tpu.vector_store %arg15[%c6_98, %c0_99], %193 {strides = array<i32>} : memref<8x1xf32, #tpu.memory_space<vmem>>, vector<2x1xf32>,
      %c6_100 = arith.constant 6 : index
      %c0_101 = arith.constant 0 : index
      %195 = vector.load %arg16[%c6_100, %c0_101] : memref<8x1xf32, #tpu.memory_space<vmem>>, vector<2x1xf32>
      %196 = arith.mulf %189, %189 : vector<2x128xf32>
      %cst_102 = arith.constant dense<0.000000e+00> : vector<2xf32>
      %197 = vector.multi_reduction <add>, %196, %cst_102 [1] : vector<2x128xf32> to vector<2xf32>
      %198 = vector.shape_cast %197 : vector<2xf32> to vector<2x1xf32>
      %199 = arith.addf %195, %198 : vector<2x1xf32>
      %c6_103 = arith.constant 6 : index
      %c0_104 = arith.constant 0 : index
      %200 = vector.load %arg16[%c6_103, %c0_104] : memref<8x1xf32, #tpu.memory_space<vmem>>, vector<2x1xf32>
      tpu.vector_store %arg16[%c6_103, %c0_104], %199 {strides = array<i32>} : memref<8x1xf32, #tpu.memory_space<vmem>>, vector<2x1xf32>,
      %cst_105 = arith.constant 0.000000e+00 : f32
      %201 = vector.shape_cast %2 : vector<1x128xi1> to vector<1x128xi1>
      %202 = vector.broadcast %201 : vector<1x128xi1> to vector<8x128xi1>
      %203 = vector.broadcast %cst_105 : f32 to vector<8x128xf32>
      %204 = arith.select %202, %73, %203 : vector<8x128xi1>, vector<8x128xf32>
      %c0_106 = arith.constant 0 : index
      %c0_107 = arith.constant 0 : index
      %205 = vector.load %arg17[%c0_106, %c0_107] : memref<8x1xf32, #tpu.memory_space<vmem>>, vector<8x1xf32>
      %cst_108 = arith.constant dense<0.000000e+00> : vector<8xf32>
      %206 = vector.multi_reduction <add>, %204, %cst_108 [1] : vector<8x128xf32> to vector<8xf32>
      %207 = vector.shape_cast %206 : vector<8xf32> to vector<8x1xf32>
      %208 = arith.addf %205, %207 : vector<8x1xf32>
      %c0_109 = arith.constant 0 : index
      %c0_110 = arith.constant 0 : index
      %209 = vector.load %arg17[%c0_109, %c0_110] : memref<8x1xf32, #tpu.memory_space<vmem>>, vector<8x1xf32>
      tpu.vector_store %arg17[%c0_109, %c0_110], %208 {strides = array<i32>} : memref<8x1xf32, #tpu.memory_space<vmem>>, vector<8x1xf32>,
      %c0_111 = arith.constant 0 : index
      %c0_112 = arith.constant 0 : index
      %210 = vector.load %arg18[%c0_111, %c0_112] : memref<8x1xf32, #tpu.memory_space<vmem>>, vector<8x1xf32>
      %211 = arith.mulf %204, %204 : vector<8x128xf32>
      %cst_113 = arith.constant dense<0.000000e+00> : vector<8xf32>
      %212 = vector.multi_reduction <add>, %211, %cst_113 [1] : vector<8x128xf32> to vector<8xf32>
      %213 = vector.shape_cast %212 : vector<8xf32> to vector<8x1xf32>
      %214 = arith.addf %210, %213 : vector<8x1xf32>
      %c0_114 = arith.constant 0 : index
      %c0_115 = arith.constant 0 : index
      %215 = vector.load %arg18[%c0_114, %c0_115] : memref<8x1xf32, #tpu.memory_space<vmem>>, vector<8x1xf32>
      tpu.vector_store %arg18[%c0_114, %c0_115], %214 {strides = array<i32>} : memref<8x1xf32, #tpu.memory_space<vmem>>, vector<8x1xf32>,
    } else {
    }
    %c1_i32_81 = arith.constant 1 : i32
    %168 = arith.cmpi eq, %arg0, %c1_i32_81 : i32
    %169 = arith.extui %168 : i1 to i32
    %cst_82 = arith.constant 3.125000e-02 : f32
    %c0_i32_83 = arith.constant 0 : i32
    %170 = arith.cmpi ne, %169, %c0_i32_83 : i32
    scf.if %170 {
      %c0_84 = arith.constant 0 : index
      %c0_85 = arith.constant 0 : index
      %171 = vector.load %arg15[%c0_84, %c0_85] : memref<8x1xf32, #tpu.memory_space<vmem>>, vector<8x1xf32>
      %172 = vector.broadcast %cst_82 : f32 to vector<8x1xf32>
      %173 = arith.mulf %171, %172 : vector<8x1xf32>
      %c0_86 = arith.constant 0 : index
      %c0_87 = arith.constant 0 : index
      %174 = vector.load %arg16[%c0_86, %c0_87] : memref<8x1xf32, #tpu.memory_space<vmem>>, vector<8x1xf32>
      %175 = vector.broadcast %cst_82 : f32 to vector<8x1xf32>
      %176 = arith.mulf %174, %175 : vector<8x1xf32>
      %177 = arith.mulf %173, %173 : vector<8x1xf32>
      %178 = arith.subf %176, %177 : vector<8x1xf32>
      %c0_88 = arith.constant 0 : index
      %c0_89 = arith.constant 0 : index
      %179 = vector.load %arg8[%c0_88, %c0_89] : memref<8x1xf32, #tpu.memory_space<vmem>>, vector<8x1xf32>
      %cst_90 = arith.constant 9.99999974E-6 : f32
      %180 = vector.broadcast %cst_90 : f32 to vector<8x1xf32>
      %181 = arith.addf %178, %180 : vector<8x1xf32>
      %182 = math.rsqrt %181 : vector<8x1xf32>
      %183 = arith.mulf %179, %182 : vector<8x1xf32>
      %c0_91 = arith.constant 0 : index
      %c0_92 = arith.constant 0 : index
      %184 = vector.load %arg9[%c0_91, %c0_92] : memref<8x1xf32, #tpu.memory_space<vmem>>, vector<8x1xf32>
      %185 = arith.mulf %173, %183 : vector<8x1xf32>
      %186 = arith.subf %184, %185 : vector<8x1xf32>
      %c0_93 = arith.constant 0 : index
      %c0_94 = arith.constant 0 : index
      %187 = vector.load %arg17[%c0_93, %c0_94] : memref<8x1xf32, #tpu.memory_space<vmem>>, vector<8x1xf32>
      %188 = vector.broadcast %cst_82 : f32 to vector<8x1xf32>
      %189 = arith.mulf %187, %188 : vector<8x1xf32>
      %c0_95 = arith.constant 0 : index
      %c0_96 = arith.constant 0 : index
      %190 = vector.load %arg18[%c0_95, %c0_96] : memref<8x1xf32, #tpu.memory_space<vmem>>, vector<8x1xf32>
      %191 = vector.broadcast %cst_82 : f32 to vector<8x1xf32>
      %192 = arith.mulf %190, %191 : vector<8x1xf32>
      %193 = arith.mulf %189, %189 : vector<8x1xf32>
      %194 = arith.subf %192, %193 : vector<8x1xf32>
      %c0_97 = arith.constant 0 : index
      %c0_98 = arith.constant 0 : index
      %195 = vector.load %arg10[%c0_97, %c0_98] : memref<8x1xf32, #tpu.memory_space<vmem>>, vector<8x1xf32>
      %cst_99 = arith.constant 9.99999974E-6 : f32
      %196 = vector.broadcast %cst_99 : f32 to vector<8x1xf32>
      %197 = arith.addf %194, %196 : vector<8x1xf32>
      %198 = math.rsqrt %197 : vector<8x1xf32>
      %199 = arith.mulf %195, %198 : vector<8x1xf32>
      %c0_100 = arith.constant 0 : index
      %c0_101 = arith.constant 0 : index
      %200 = vector.load %arg11[%c0_100, %c0_101] : memref<8x1xf32, #tpu.memory_space<vmem>>, vector<8x1xf32>
      %201 = arith.mulf %189, %199 : vector<8x1xf32>
      %202 = arith.subf %200, %201 : vector<8x1xf32>
      %203 = vector.broadcast %199 : vector<8x1xf32> to vector<8x128xf32>
      %204 = arith.mulf %73, %203 : vector<8x128xf32>
      %205 = vector.broadcast %202 : vector<8x1xf32> to vector<8x128xf32>
      %206 = arith.addf %204, %205 : vector<8x128xf32>
      %207 = vector.extract_strided_slice %183 {offsets = [0, 0], sizes = [6, 1], strides = [1, 1]} : vector<8x1xf32> to vector<6x1xf32>
      %208 = vector.broadcast %207 : vector<6x1xf32> to vector<6x128xf32>
      %209 = arith.mulf %117, %208 : vector<6x128xf32>
      %210 = vector.extract_strided_slice %186 {offsets = [0, 0], sizes = [6, 1], strides = [1, 1]} : vector<8x1xf32> to vector<6x1xf32>
      %211 = vector.broadcast %210 : vector<6x1xf32> to vector<6x128xf32>
      %212 = arith.addf %209, %211 : vector<6x128xf32>
      %213 = vector.extract_strided_slice %206 {offsets = [0, 0], sizes = [6, 128], strides = [1, 1]} : vector<8x128xf32> to vector<6x128xf32>
      %214 = arith.addf %212, %213 : vector<6x128xf32>
      %cst_102 = arith.constant 0.000000e+00 : f32
      %215 = vector.broadcast %cst_102 : f32 to vector<6x128xf32>
      %216 = arith.maximumf %214, %215 : vector<6x128xf32>
      %c0_103 = arith.constant 0 : index
      %c0_104 = arith.constant 0 : index
      %217 = vector.load %arg12[%c0_103, %c0_104] : memref<8x128xf32, #tpu.memory_space<vmem>>, vector<6x128xf32>
      tpu.vector_store %arg12[%c0_103, %c0_104], %216 {strides = array<i32>} : memref<8x128xf32, #tpu.memory_space<vmem>>, vector<6x128xf32>,
      %218 = vector.extract_strided_slice %183 {offsets = [6, 0], sizes = [2, 1], strides = [1, 1]} : vector<8x1xf32> to vector<2x1xf32>
      %219 = vector.broadcast %218 : vector<2x1xf32> to vector<2x128xf32>
      %220 = arith.mulf %159, %219 : vector<2x128xf32>
      %221 = vector.extract_strided_slice %186 {offsets = [6, 0], sizes = [2, 1], strides = [1, 1]} : vector<8x1xf32> to vector<2x1xf32>
      %222 = vector.broadcast %221 : vector<2x1xf32> to vector<2x128xf32>
      %223 = arith.addf %220, %222 : vector<2x128xf32>
      %224 = vector.extract_strided_slice %206 {offsets = [6, 0], sizes = [2, 128], strides = [1, 1]} : vector<8x128xf32> to vector<2x128xf32>
      %225 = arith.addf %223, %224 : vector<2x128xf32>
      %cst_105 = arith.constant 0.000000e+00 : f32
      %226 = vector.broadcast %cst_105 : f32 to vector<2x128xf32>
      %227 = arith.maximumf %225, %226 : vector<2x128xf32>
      %c6 = arith.constant 6 : index
      %c0_106 = arith.constant 0 : index
      %228 = vector.load %arg12[%c6, %c0_106] : memref<8x128xf32, #tpu.memory_space<vmem>>, vector<2x128xf32>
      tpu.vector_store %arg12[%c6, %c0_106], %227 {strides = array<i32>} : memref<8x128xf32, #tpu.memory_space<vmem>>, vector<2x128xf32>,
    } else {
    }
    return
  }
  func.func @transform_0(%arg0: i32, %arg1: i32) -> (i32, i32) {
    %c0_i32 = arith.constant 0 : i32
    %c0_i32_0 = arith.constant 0 : i32
    return %c0_i32, %arg1 : i32, i32
  }
  func.func @transform_1(%arg0: i32, %arg1: i32) -> (i32, i32) {
    %c0_i32 = arith.constant 0 : i32
    %c0_i32_0 = arith.constant 0 : i32
    return %c0_i32, %arg1 : i32, i32
  }
  func.func @transform_2(%arg0: i32, %arg1: i32) -> (i32, i32) {
    %c0_i32 = arith.constant 0 : i32
    %c0_i32_0 = arith.constant 0 : i32
    %c0_i32_1 = arith.constant 0 : i32
    return %c0_i32, %c0_i32_0 : i32, i32
  }
  func.func @transform_3(%arg0: i32, %arg1: i32) -> (i32, i32) {
    %c0_i32 = arith.constant 0 : i32
    %c0_i32_0 = arith.constant 0 : i32
    %c0_i32_1 = arith.constant 0 : i32
    return %c0_i32, %c0_i32_0 : i32, i32
  }
  func.func @transform_4(%arg0: i32, %arg1: i32) -> (i32, i32) {
    %c0_i32 = arith.constant 0 : i32
    %c0_i32_0 = arith.constant 0 : i32
    %c0_i32_1 = arith.constant 0 : i32
    return %c0_i32, %c0_i32_0 : i32, i32
  }
  func.func @transform_5(%arg0: i32, %arg1: i32) -> (i32, i32) {
    %c0_i32 = arith.constant 0 : i32
    %c0_i32_0 = arith.constant 0 : i32
    %c0_i32_1 = arith.constant 0 : i32
    return %c0_i32, %c0_i32_0 : i32, i32
  }
  func.func @transform_6(%arg0: i32, %arg1: i32) -> (i32, i32) {
    %c0_i32 = arith.constant 0 : i32
    %c0_i32_0 = arith.constant 0 : i32
    %c0_i32_1 = arith.constant 0 : i32
    return %c0_i32, %c0_i32_0 : i32, i32
  }
  func.func @transform_7(%arg0: i32, %arg1: i32) -> (i32, i32) {
    %c0_i32 = arith.constant 0 : i32
    %c0_i32_0 = arith.constant 0 : i32
    %c0_i32_1 = arith.constant 0 : i32
    return %c0_i32, %c0_i32_0 : i32, i32
  }
  func.func @transform_8(%arg0: i32, %arg1: i32) -> (i32, i32) {
    %c0_i32 = arith.constant 0 : i32
    %c0_i32_0 = arith.constant 0 : i32
    %c0_i32_1 = arith.constant 0 : i32
    return %c0_i32, %c0_i32_0 : i32, i32
  }
  func.func @transform_9(%arg0: i32, %arg1: i32) -> (i32, i32) {
    %c0_i32 = arith.constant 0 : i32
    %c0_i32_0 = arith.constant 0 : i32
    %c0_i32_1 = arith.constant 0 : i32
    return %c0_i32, %c0_i32_0 : i32, i32
  }
  func.func @transform_10(%arg0: i32, %arg1: i32) -> (i32, i32) {
    %c0_i32 = arith.constant 0 : i32
    %c0_i32_0 = arith.constant 0 : i32
    return %c0_i32, %arg1 : i32, i32
  }
}

</mosaic_0001>

<llo_original>
// kernel: inception_block_forward.1
$region0: #{inception_block_forward.1}
  #allocation0 [shape = 'u32[]', space=smem, size = 0x4, offset = 0x4, fixed_abs, tag = 'smem constant byte address 0x4 - core index']
  #allocation1 [shape = 'u32[72,128]{1,0:T(1,128)}', space=vmem, size = 0x9000, scoped, tag = 'internal scratch']
  #allocation2 [shape = 'f32[28,128]{1,0:T(8,128)}', space=vmem, size = 0x4000, scoped, tag = 'scratch operand']
  #allocation3 [shape = 'f32[16,128]{1,0:T(8,128)}', space=vmem, size = 0x2000, scoped, tag = 'scratch operand']
  #allocation4 [shape = 'f32[8,1]{1,0:T(8,128)}', space=vmem, size = 0x1000, scoped, tag = 'scratch operand']
  #allocation5 [shape = 'f32[8,1]{1,0:T(8,128)}', space=vmem, size = 0x1000, scoped, tag = 'scratch operand']
  #allocation6 [shape = 'f32[8,1]{1,0:T(8,128)}', space=vmem, size = 0x1000, scoped, tag = 'scratch operand']
  #allocation7 [shape = 'f32[8,1]{1,0:T(8,128)}', space=vmem, size = 0x1000, scoped, tag = 'scratch operand']
  %s0 = inlined_call_operand.vmem [shape: s32[1,128], index: 0, kind: input, shape index: {}]
  %s1 = inlined_call_operand.vmem [shape: f32[4,128], index: 1, kind: input, shape index: {}]
  %s2 = inlined_call_operand.vmem [shape: f32[12,4], index: 2, kind: input, shape index: {}]
  %s3 = inlined_call_operand.vmem [shape: f32[4,1], index: 3, kind: input, shape index: {}]
  %s4 = inlined_call_operand.vmem [shape: f32[6,28], index: 4, kind: input, shape index: {}]
  %s5 = inlined_call_operand.vmem [shape: f32[2,16], index: 5, kind: input, shape index: {}]
  %s6 = inlined_call_operand.vmem [shape: f32[8,1], index: 6, kind: input, shape index: {}]
  %s7 = inlined_call_operand.vmem [shape: f32[8,1], index: 7, kind: input, shape index: {}]
  %s8 = inlined_call_operand.vmem [shape: f32[8,1], index: 8, kind: input, shape index: {}]
  %s9 = inlined_call_operand.vmem [shape: f32[8,1], index: 9, kind: input, shape index: {}]
  %s10 = inlined_call_operand.vmem [shape: f32[8,128], index: 10, kind: output, shape index: {}]
  %s11 = sld [smem:[#allocation0]]
  $region85: #{inception_block_forward.1} parent=0
    _
  %s13 = ssub.s32 1, %s11
  %s14 = scalar_select 0, %s13, %s11
  loop: start=0, step=1, limit=4
  $region2: #{inception_block_forward.1} parent=0 // loop_pre_header
    _
  $region3: #{inception_block_forward.1} parent=0 // loop_header
    %s16 = sphi 0, %s20
    %p17 = scmp.ge.s32.totalorder %s16, 4
    %s23 = sphi 0, %s35
    %s24 = sphi 0, %s31
    %s25 = sphi 0, %s23
    %s26 = sphi 0, %s24
    %s27 = sphi 0, %s25
    %s28 = sphi 0, %s26
    %s38 = sphi 0, %s40
    %s41 = sphi 0, %s38
    %s42 = sphi 0, %s41
    %s58 = sphi 0, %s42
    %s64 = sphi 0, %s66
    %s67 = sphi 0, %s64
    %s68 = sphi 0, %s67
    %s84 = sphi 0, %s68
    %s88 = sphi 0, %s88
    %s90 = sphi 0, %s88
    %s91 = sphi 0, %s90
    %s105 = sphi 0, %s91
    %s109 = sphi 0, %s109
    %s111 = sphi 0, %s109
    %s112 = sphi 0, %s111
    %s126 = sphi 0, %s112
    %s130 = sphi 0, %s130
    %s132 = sphi 0, %s130
    %s133 = sphi 0, %s132
    %s147 = sphi 0, %s133
    %s151 = sphi 0, %s151
    %s153 = sphi 0, %s151
    %s154 = sphi 0, %s153
    %s168 = sphi 0, %s154
    %s172 = sphi 0, %s172
    %s174 = sphi 0, %s172
    %s175 = sphi 0, %s174
    %s189 = sphi 0, %s175
    %s193 = sphi 0, %s193
    %s195 = sphi 0, %s193
    %s196 = sphi 0, %s195
    %s210 = sphi 0, %s196
    %s214 = sphi 0, %s214
    %s216 = sphi 0, %s214
    %s217 = sphi 0, %s216
    %s231 = sphi 0, %s217
    %s235 = sphi 0, %s235
    %s237 = sphi 0, %s235
    %s238 = sphi 0, %s237
    %s252 = sphi 0, %s238
    %s258 = sphi 0, %s260
    %s261 = sphi 0, %s258
    %s262 = sphi 0, %s261
    %s278 = sphi 0, %s262
  $region4: #{inception_block_forward.1} parent=0 // loop_header_branch
    %19 = sbr.rel (%p17) target = $region8
  $region5: #{inception_block_forward.1} parent=0 // loop_body
    %s21 = ssub.s32 %s16, 1
    %s22 = ssub.s32 %s16, 2
    %s29 = sadd.s32 1, %s24
    %p30 = scmp.ge.s32.totalorder %s29, 1
    %s31 = scalar_select %p30, 0, %s29
    %s32 = sadd.s32 1, %s23
    %s33 = scalar_select %p30, %s32, %s23
    %p34 = scmp.ge.s32.totalorder %s33, 2
    %s35 = scalar_select %p34, 0, %s33
    %s36 = ssub.s32 %s24, %s31
    %p37 = scmp.eq.s32.totalorder %s36, 0
    %s39 = sadd.s32 %s38, 1
    %s40 = scalar_select %p37, %s38, %s39
    %p43 = pneg %p37
    %p44 = scmp.eq.s32.totalorder %s16, 1
    %p45 = por %p43, %p44
    %p46 = scmp.ne.s32.totalorder %s38, %s41
    %p47 = scmp.eq.s32.totalorder %s16, 0
    %p48 = por %p46, %p47
    %p49 = scmp.ne.s32.totalorder %s38, %s41
    %p50 = scmp.eq.s32.totalorder %s21, 1
    %p51 = por %p49, %p50
    %p52 = scmp.ne.s32.totalorder %s41, %s42
    %p53 = scmp.eq.s32.totalorder %s21, 0
    %p54 = por %p52, %p53
    %p55 = scmp.ne.s32.totalorder %s41, %s42
    %p56 = scmp.eq.s32.totalorder %s22, 1
    %p57 = por %p55, %p56
    %p59 = scmp.ne.s32.totalorder %s42, %s58
    %p60 = scmp.eq.s32.totalorder %s22, 0
    %p61 = por %p59, %p60
    %s62 = ssub.s32 %s24, %s31
    %p63 = scmp.eq.s32.totalorder %s62, 0
    %s65 = sadd.s32 %s64, 1
    %s66 = scalar_select %p63, %s64, %s65
    %p69 = pneg %p63
    %p70 = scmp.eq.s32.totalorder %s16, 1
    %p71 = por %p69, %p70
    %p72 = scmp.ne.s32.totalorder %s64, %s67
    %p73 = scmp.eq.s32.totalorder %s16, 0
    %p74 = por %p72, %p73
    %p75 = scmp.ne.s32.totalorder %s64, %s67
    %p76 = scmp.eq.s32.totalorder %s21, 1
    %p77 = por %p75, %p76
    %p78 = scmp.ne.s32.totalorder %s67, %s68
    %p79 = scmp.eq.s32.totalorder %s21, 0
    %p80 = por %p78, %p79
    %p81 = scmp.ne.s32.totalorder %s67, %s68
    %p82 = scmp.eq.s32.totalorder %s22, 1
    %p83 = por %p81, %p82
    %p85 = scmp.ne.s32.totalorder %s68, %s84
    %p86 = scmp.eq.s32.totalorder %s22, 0
    %p87 = por %p85, %p86
    %s89 = sadd.s32 %s88, 1
    %p92 = scmp.eq.s32.totalorder %s16, 1
    %p93 = scmp.ne.s32.totalorder %s88, %s90
    %p94 = scmp.eq.s32.totalorder %s16, 0
    %p95 = por %p93, %p94
    %p96 = scmp.ne.s32.totalorder %s88, %s90
    %p97 = scmp.eq.s32.totalorder %s21, 1
    %p98 = por %p96, %p97
    %p99 = scmp.ne.s32.totalorder %s90, %s91
    %p100 = scmp.eq.s32.totalorder %s21, 0
    %p101 = por %p99, %p100
    %p102 = scmp.ne.s32.totalorder %s90, %s91
    %p103 = scmp.eq.s32.totalorder %s22, 1
    %p104 = por %p102, %p103
    %p106 = scmp.ne.s32.totalorder %s91, %s105
    %p107 = scmp.eq.s32.totalorder %s22, 0
    %p108 = por %p106, %p107
    %s110 = sadd.s32 %s109, 1
    %p113 = scmp.eq.s32.totalorder %s16, 1
    %p114 = scmp.ne.s32.totalorder %s109, %s111
    %p115 = scmp.eq.s32.totalorder %s16, 0
    %p116 = por %p114, %p115
    %p117 = scmp.ne.s32.totalorder %s109, %s111
    %p118 = scmp.eq.s32.totalorder %s21, 1
    %p119 = por %p117, %p118
    %p120 = scmp.ne.s32.totalorder %s111, %s112
    %p121 = scmp.eq.s32.totalorder %s21, 0
    %p122 = por %p120, %p121
    %p123 = scmp.ne.s32.totalorder %s111, %s112
    %p124 = scmp.eq.s32.totalorder %s22, 1
    %p125 = por %p123, %p124
    %p127 = scmp.ne.s32.totalorder %s112, %s126
    %p128 = scmp.eq.s32.totalorder %s22, 0
    %p129 = por %p127, %p128
    %s131 = sadd.s32 %s130, 1
    %p134 = scmp.eq.s32.totalorder %s16, 1
    %p135 = scmp.ne.s32.totalorder %s130, %s132
    %p136 = scmp.eq.s32.totalorder %s16, 0
    %p137 = por %p135, %p136
    %p138 = scmp.ne.s32.totalorder %s130, %s132
    %p139 = scmp.eq.s32.totalorder %s21, 1
    %p140 = por %p138, %p139
    %p141 = scmp.ne.s32.totalorder %s132, %s133
    %p142 = scmp.eq.s32.totalorder %s21, 0
    %p143 = por %p141, %p142
    %p144 = scmp.ne.s32.totalorder %s132, %s133
    %p145 = scmp.eq.s32.totalorder %s22, 1
    %p146 = por %p144, %p145
    %p148 = scmp.ne.s32.totalorder %s133, %s147
    %p149 = scmp.eq.s32.totalorder %s22, 0
    %p150 = por %p148, %p149
    %s152 = sadd.s32 %s151, 1
    %p155 = scmp.eq.s32.totalorder %s16, 1
    %p156 = scmp.ne.s32.totalorder %s151, %s153
    %p157 = scmp.eq.s32.totalorder %s16, 0
    %p158 = por %p156, %p157
    %p159 = scmp.ne.s32.totalorder %s151, %s153
    %p160 = scmp.eq.s32.totalorder %s21, 1
    %p161 = por %p159, %p160
    %p162 = scmp.ne.s32.totalorder %s153, %s154
    %p163 = scmp.eq.s32.totalorder %s21, 0
    %p164 = por %p162, %p163
    %p165 = scmp.ne.s32.totalorder %s153, %s154
    %p166 = scmp.eq.s32.totalorder %s22, 1
    %p167 = por %p165, %p166
    %p169 = scmp.ne.s32.totalorder %s154, %s168
    %p170 = scmp.eq.s32.totalorder %s22, 0
    %p171 = por %p169, %p170
    %s173 = sadd.s32 %s172, 1
    %p176 = scmp.eq.s32.totalorder %s16, 1
    %p177 = scmp.ne.s32.totalorder %s172, %s174
    %p178 = scmp.eq.s32.totalorder %s16, 0
    %p179 = por %p177, %p178
    %p180 = scmp.ne.s32.totalorder %s172, %s174
    %p181 = scmp.eq.s32.totalorder %s21, 1
    %p182 = por %p180, %p181
    %p183 = scmp.ne.s32.totalorder %s174, %s175
    %p184 = scmp.eq.s32.totalorder %s21, 0
    %p185 = por %p183, %p184
    %p186 = scmp.ne.s32.totalorder %s174, %s175
    %p187 = scmp.eq.s32.totalorder %s22, 1
    %p188 = por %p186, %p187
    %p190 = scmp.ne.s32.totalorder %s175, %s189
    %p191 = scmp.eq.s32.totalorder %s22, 0
    %p192 = por %p190, %p191
    %s194 = sadd.s32 %s193, 1
    %p197 = scmp.eq.s32.totalorder %s16, 1
    %p198 = scmp.ne.s32.totalorder %s193, %s195
    %p199 = scmp.eq.s32.totalorder %s16, 0
    %p200 = por %p198, %p199
    %p201 = scmp.ne.s32.totalorder %s193, %s195
    %p202 = scmp.eq.s32.totalorder %s21, 1
    %p203 = por %p201, %p202
    %p204 = scmp.ne.s32.totalorder %s195, %s196
    %p205 = scmp.eq.s32.totalorder %s21, 0
    %p206 = por %p204, %p205
    %p207 = scmp.ne.s32.totalorder %s195, %s196
    %p208 = scmp.eq.s32.totalorder %s22, 1
    %p209 = por %p207, %p208
    %p211 = scmp.ne.s32.totalorder %s196, %s210
    %p212 = scmp.eq.s32.totalorder %s22, 0
    %p213 = por %p211, %p212
    %s215 = sadd.s32 %s214, 1
    %p218 = scmp.eq.s32.totalorder %s16, 1
    %p219 = scmp.ne.s32.totalorder %s214, %s216
    %p220 = scmp.eq.s32.totalorder %s16, 0
    %p221 = por %p219, %p220
    %p222 = scmp.ne.s32.totalorder %s214, %s216
    %p223 = scmp.eq.s32.totalorder %s21, 1
    %p224 = por %p222, %p223
    %p225 = scmp.ne.s32.totalorder %s216, %s217
    %p226 = scmp.eq.s32.totalorder %s21, 0
    %p227 = por %p225, %p226
    %p228 = scmp.ne.s32.totalorder %s216, %s217
    %p229 = scmp.eq.s32.totalorder %s22, 1
    %p230 = por %p228, %p229
    %p232 = scmp.ne.s32.totalorder %s217, %s231
    %p233 = scmp.eq.s32.totalorder %s22, 0
    %p234 = por %p232, %p233
    %s236 = sadd.s32 %s235, 1
    %p239 = scmp.eq.s32.totalorder %s16, 1
    %p240 = scmp.ne.s32.totalorder %s235, %s237
    %p241 = scmp.eq.s32.totalorder %s16, 0
    %p242 = por %p240, %p241
    %p243 = scmp.ne.s32.totalorder %s235, %s237
    %p244 = scmp.eq.s32.totalorder %s21, 1
    %p245 = por %p243, %p244
    %p246 = scmp.ne.s32.totalorder %s237, %s238
    %p247 = scmp.eq.s32.totalorder %s21, 0
    %p248 = por %p246, %p247
    %p249 = scmp.ne.s32.totalorder %s237, %s238
    %p250 = scmp.eq.s32.totalorder %s22, 1
    %p251 = por %p249, %p250
    %p253 = scmp.ne.s32.totalorder %s238, %s252
    %p254 = scmp.eq.s32.totalorder %s22, 0
    %p255 = por %p253, %p254
    %s256 = ssub.s32 %s24, %s31
    %p257 = scmp.eq.s32.totalorder %s256, 0
    %s259 = sadd.s32 %s258, 1
    %s260 = scalar_select %p257, %s258, %s259
    %p263 = pneg %p257
    %p264 = scmp.eq.s32.totalorder %s16, 1
    %p265 = por %p263, %p264
    %p266 = scmp.ne.s32.totalorder %s258, %s261
    %p267 = scmp.eq.s32.totalorder %s16, 0
    %p268 = por %p266, %p267
    %p269 = scmp.ne.s32.totalorder %s258, %s261
    %p270 = scmp.eq.s32.totalorder %s21, 1
    %p271 = por %p269, %p270
    %p272 = scmp.ne.s32.totalorder %s261, %s262
    %p273 = scmp.eq.s32.totalorder %s21, 0
    %p274 = por %p272, %p273
    %p275 = scmp.ne.s32.totalorder %s261, %s262
    %p276 = scmp.eq.s32.totalorder %s22, 1
    %p277 = por %p275, %p276
    %p279 = scmp.ne.s32.totalorder %s262, %s278
    %p280 = scmp.eq.s32.totalorder %s22, 0
    %p281 = por %p279, %p280
    %p282 = scmp.le.s32.totalorder 1, %s16
    %p283 = scmp.lt.s32.totalorder %s16, 3
    %p284 = pnand %p282, %p283
    %p285 = pneg %p284
    // Predicated region
    $region9: #{inception_block_forward.1} parent=5 // pred_check
      _
    $region10: #{inception_block_forward.1} parent=5 // pred_check_branch
      %287 = sbr.rel (%p284) target = $region12
    $region11: #{inception_block_forward.1} parent=5 // pred_region
      %s288 = ssub.s32 %s16, 1
      // Predicated region
      $region13: #{inception_block_forward.1} parent=11 // pred_check
        %p289 = pneg %p54
      $region14: #{inception_block_forward.1} parent=11 // pred_check_branch
        %291 = sbr.rel (%p289) target = $region16
      $region15: #{inception_block_forward.1} parent=11 // pred_region
        %p292 = scmp.lt.s32.totalorder %s26, 0
        %s293 = scalar_select %p292, %s26, 0
        %s294 = scalar_lea.vmem %s0, %s293
      $region16: #{inception_block_forward.1} parent=11 // pred_fallthru
        _
      // Predicated region
      $region17: #{inception_block_forward.1} parent=11 // pred_check
        %p295 = pneg %p80
      $region18: #{inception_block_forward.1} parent=11 // pred_check_branch
        %297 = sbr.rel (%p295) target = $region20
      $region19: #{inception_block_forward.1} parent=11 // pred_region
        %p298 = scmp.lt.s32.totalorder %s26, 0
        %s299 = scalar_select %p298, %s26, 0
        %s300 = smul.addr %s299, 4
        %s301 = scalar_lea.vmem %s1, %s300
      $region20: #{inception_block_forward.1} parent=11 // pred_fallthru
        _
      // Predicated region
      $region21: #{inception_block_forward.1} parent=11 // pred_check
        %p302 = pneg %p101
      $region22: #{inception_block_forward.1} parent=11 // pred_check_branch
        %304 = sbr.rel (%p302) target = $region24
      $region23: #{inception_block_forward.1} parent=11 // pred_region
        _
      $region24: #{inception_block_forward.1} parent=11 // pred_fallthru
        _
      // Predicated region
      $region25: #{inception_block_forward.1} parent=11 // pred_check
        %p305 = pneg %p122
      $region26: #{inception_block_forward.1} parent=11 // pred_check_branch
        %307 = sbr.rel (%p305) target = $region28
      $region27: #{inception_block_forward.1} parent=11 // pred_region
        _
      $region28: #{inception_block_forward.1} parent=11 // pred_fallthru
        _
      // Predicated region
      $region29: #{inception_block_forward.1} parent=11 // pred_check
        %p308 = pneg %p143
      $region30: #{inception_block_forward.1} parent=11 // pred_check_branch
        %310 = sbr.rel (%p308) target = $region32
      $region31: #{inception_block_forward.1} parent=11 // pred_region
        _
      $region32: #{inception_block_forward.1} parent=11 // pred_fallthru
        _
      // Predicated region
      $region33: #{inception_block_forward.1} parent=11 // pred_check
        %p311 = pneg %p164
      $region34: #{inception_block_forward.1} parent=11 // pred_check_branch
        %313 = sbr.rel (%p311) target = $region36
      $region35: #{inception_block_forward.1} parent=11 // pred_region
        _
      $region36: #{inception_block_forward.1} parent=11 // pred_fallthru
        _
      // Predicated region
      $region37: #{inception_block_forward.1} parent=11 // pred_check
        %p314 = pneg %p185
      $region38: #{inception_block_forward.1} parent=11 // pred_check_branch
        %316 = sbr.rel (%p314) target = $region40
      $region39: #{inception_block_forward.1} parent=11 // pred_region
        _
      $region40: #{inception_block_forward.1} parent=11 // pred_fallthru
        _
      // Predicated region
      $region41: #{inception_block_forward.1} parent=11 // pred_check
        %p317 = pneg %p206
      $region42: #{inception_block_forward.1} parent=11 // pred_check_branch
        %319 = sbr.rel (%p317) target = $region44
      $region43: #{inception_block_forward.1} parent=11 // pred_region
        _
      $region44: #{inception_block_forward.1} parent=11 // pred_fallthru
        _
      // Predicated region
      $region45: #{inception_block_forward.1} parent=11 // pred_check
        %p320 = pneg %p227
      $region46: #{inception_block_forward.1} parent=11 // pred_check_branch
        %322 = sbr.rel (%p320) target = $region48
      $region47: #{inception_block_forward.1} parent=11 // pred_region
        _
      $region48: #{inception_block_forward.1} parent=11 // pred_fallthru
        _
      // Predicated region
      $region49: #{inception_block_forward.1} parent=11 // pred_check
        %p323 = pneg %p248
      $region50: #{inception_block_forward.1} parent=11 // pred_check_branch
        %325 = sbr.rel (%p323) target = $region52
      $region51: #{inception_block_forward.1} parent=11 // pred_region
        _
      $region52: #{inception_block_forward.1} parent=11 // pred_fallthru
        _
    $region12: #{inception_block_forward.1} parent=5 // pred_fallthru
      _
    %p326 = scmp.lt.s32.totalorder %s16, 2
    // Predicated region
    $region53: #{inception_block_forward.1} parent=5 // pred_check
      %p327 = pneg %p326
    $region54: #{inception_block_forward.1} parent=5 // pred_check_branch
      %329 = sbr.rel (%p327) target = $region56
    $region55: #{inception_block_forward.1} parent=5 // pred_region
      _
    $region56: #{inception_block_forward.1} parent=5 // pred_fallthru
      _
    %p330 = scmp.le.s32.totalorder 1, %s16
    %p331 = scmp.lt.s32.totalorder %s16, 3
    %p332 = pnand %p330, %p331
    %p333 = pneg %p332
    // Predicated region
    $region57: #{inception_block_forward.1} parent=5 // pred_check
      _
    $region58: #{inception_block_forward.1} parent=5 // pred_check_branch
      %335 = sbr.rel (%p332) target = $region60
    $region59: #{inception_block_forward.1} parent=5 // pred_region
      %s336 = ssub.s32 %s16, 1
      %p337 = scmp.lt.s32.totalorder %s26, 0
      %s338 = scalar_select %p337, %s26, 0
      %s339 = scalar_lea.vmem %s0, %s338
      %p340 = pneg %p54
      %p341 = pneg %p51
      %p342 = scmp.lt.s32.totalorder %s26, 0
      %s343 = scalar_select %p342, %s26, 0
      %s344 = smul.addr %s343, 4
      %s345 = scalar_lea.vmem %s1, %s344
      %p346 = pneg %p80
      %p347 = pneg %p77
      %p348 = pneg %p101
      %p349 = pneg %p98
      %p350 = pneg %p122
      %p351 = pneg %p119
      %p352 = pneg %p143
      %p353 = pneg %p140
      %p354 = pneg %p164
      %p355 = pneg %p161
      %p356 = pneg %p185
      %p357 = pneg %p182
      %p358 = pneg %p206
      %p359 = pneg %p203
      %p360 = pneg %p227
      %p361 = pneg %p224
      %p362 = pneg %p248
      %p363 = pneg %p245
      %p364 = pneg %p274
      %p365 = pneg %p271
      %p366 = scmp.lt.s32.totalorder %s26, 0
      %s367 = scalar_select %p366, %s26, 0
      %s368 = smul.addr %s367, 8
      %s369 = scalar_lea.vmem %s10, %s368
      %p370 = scmp.lt.s32.totalorder %s26, 0
      %s371 = scalar_select %p370, %s26, 0
      %s372 = scalar_lea.vmem %s0, %s371
      %p373 = scmp.lt.s32.totalorder %s26, 0
      %s374 = scalar_select %p373, %s26, 0
      %s375 = smul.addr %s374, 4
      %s376 = scalar_lea.vmem %s1, %s375
      %p377 = scmp.lt.s32.totalorder %s26, 0
      %s378 = scalar_select %p377, %s26, 0
      %s379 = smul.addr %s378, 8
      %s380 = scalar_lea.vmem %s10, %s379
      %v381 = vld [vmem:[%s372] sm:$0x1]
      %vm382 = vcmp.ge.s32.totalorder %v381, 0
      %v383 = vld [vmem:[%s376] sm:$0xf]
      %v384 = vadd.s32 %v381, 4294967293
      %vm385 = vcmp.ge.s32.totalorder %v384, 0
      %vm386 = vcmp.lt.s32.totalorder %v384, 16
      %vm387 = vmand %vm385, %vm386
      %v388 = vadd.s32 %v381, 4294967294
      %vm389 = vcmp.ge.s32.totalorder %v388, 0
      %vm390 = vcmp.lt.s32.totalorder %v388, 16
      %vm391 = vmand %vm389, %vm390
      %v392 = vadd.s32 %v381, 4294967295
      %vm393 = vcmp.ge.s32.totalorder %v392, 0
      %vm394 = vcmp.lt.s32.totalorder %v392, 16
      %vm395 = vmand %vm393, %vm394
      %vm396 = vcmp.lt.s32.totalorder %v381, 16
      %vm397 = vmand %vm382, %vm396
      %v398 = vadd.s32 %v381, 1
      %vm399 = vcmp.ge.s32.totalorder %v398, 0
      %vm400 = vcmp.lt.s32.totalorder %v398, 16
      %vm401 = vmand %vm399, %vm400
      %v402 = vadd.s32 %v381, 2
      %vm403 = vcmp.ge.s32.totalorder %v402, 0
      %vm404 = vcmp.lt.s32.totalorder %v402, 16
      %vm405 = vmand %vm403, %vm404
      %v406 = vadd.s32 %v381, 3
      %vm407 = vcmp.ge.s32.totalorder %v406, 0
      %vm408 = vcmp.lt.s32.totalorder %v406, 16
      %vm409 = vmand %vm407, %vm408
      %v410 = vld [vmem:[%s2] sm:$0xff]
      %v411 = vld [vmem:[%s2 + $0x8] sm:$0xf]
      %vm412 = vcmask 31744
      %v414 = vsel %vm412, %v410, 0
      %v417 = vsel %vm412, %v411, 0
      %vm419 = vcmask 1043456
      %v421 = vsel %vm419, %v383, 0
      %423 = vmatpush.msra.mxu0 0.0
      %424 = vmatpush.msra.mxu0 0.0
      %425 = vmatpush.msra.mxu0 0.0
      %426 = vmatpush.msra.mxu0 0.0
      %427 = vmatpush.msra.mxu0 0.0
      %428 = vmatpush.msra.mxu0 0.0
      %429 = vmatpush.msra.mxu0 0.0
      %430 = vmatpush.msra.mxu0 0.0
      %431 = vmatpush.msra.mxu0 0.0
      %432 = vmatpush.msra.mxu0 0.0
      %433 = vmatpush.msra.mxu0 0.0
      %434 = vmatpush.msra.mxu0 0.0
      %435 = vmatpush.msra.mxu0 0.0
      %436 = vmatpush.msra.mxu0 0.0
      %437 = vmatpush.msra.mxu0 0.0
      %438 = vmatpush.msra.mxu0 %v421
      %439 = vmatmul.f32.gmra.mxu0 %v414
      %v440 = vpop.f32.mrf.mxu0
      %v441 = vadd.f32 0.0, %v440
      %442 = vmatmul.f32.gmra.mxu0 %v417
      %v443 = vpop.f32.mrf.mxu0
      %v444 = vadd.f32 0.0, %v443
      %445 = vdwg.mxu0
      %v446 = vld [vmem:[%s3] sm:$0xf]
      %448 = vset.pattern.permute.xlu0 0
      %449 = vperm.xlu0 %448, %v446
      %v450 = vpop.permute.xlu0 %449
      %v452 = vadd.f32 %v441, %v450
      %453 = vrot.lane.b32.xlu0 %v452, 3
      %v454 = vpop.permute.xlu0 %453
      %v455 = vsel %vm387, 1, 0
      %v456 = vperm.slane %v455, 0
      %vm457 = vcmp.eq.s32.totalorder %v456, 1
      %v458 = vsel %vm457, %v454, 0.0
      %459 = vst [vmem:[#allocation2] sm:$0xf] %v458
      %460 = vrot.lane.b32.xlu0 %v452, 2
      %v461 = vpop.permute.xlu0 %460
      %v462 = vsel %vm391, 1, 0
      %v463 = vperm.slane %v462, 0
      %vm464 = vcmp.eq.s32.totalorder %v463, 1
      %v465 = vsel %vm464, %v461, 0.0
      %466 = vst [vmem:[#allocation2 + $0x4] sm:$0xf] %v465
      %467 = vrot.lane.b32.xlu0 %v452, 1
      %v468 = vpop.permute.xlu0 %467
      %v469 = vsel %vm395, 1, 0
      %v470 = vperm.slane %v469, 0
      %vm471 = vcmp.eq.s32.totalorder %v470, 1
      %v472 = vsel %vm471, %v468, 0.0
      %473 = vst [vmem:[#allocation2 + $0x8] sm:$0xf] %v472
      %v474 = vsel %vm397, 1, 0
      %v475 = vperm.slane %v474, 0
      %vm476 = vcmp.eq.s32.totalorder %v475, 1
      %v477 = vsel %vm476, %v452, 0.0
      %478 = vst [vmem:[#allocation2 + $0xc] sm:$0xf] %v477
      %479 = vrot.lane.b32.xlu0 %v452, 127
      %v480 = vpop.permute.xlu0 %479
      %v481 = vsel %vm401, 1, 0
      %v482 = vperm.slane %v481, 0
      %vm483 = vcmp.eq.s32.totalorder %v482, 1
      %v484 = vsel %vm483, %v480, 0.0
      %485 = vst [vmem:[#allocation2 + $0x10] sm:$0xf] %v484
      %486 = vrot.lane.b32.xlu0 %v452, 126
      %v487 = vpop.permute.xlu0 %486
      %v488 = vsel %vm405, 1, 0
      %v489 = vperm.slane %v488, 0
      %vm490 = vcmp.eq.s32.totalorder %v489, 1
      %v491 = vsel %vm490, %v487, 0.0
      %492 = vst [vmem:[#allocation2 + $0x14] sm:$0xf] %v491
      %493 = vrot.lane.b32.xlu0 %v452, 125
      %v494 = vpop.permute.xlu0 %493
      %v495 = vsel %vm409, 1, 0
      %v496 = vperm.slane %v495, 0
      %vm497 = vcmp.eq.s32.totalorder %v496, 1
      %v498 = vsel %vm497, %v494, 0.0
      %499 = vst [vmem:[#allocation2 + $0x18] sm:$0xf] %v498
      %v500 = vld [vmem:[%s4] sm:$0x3f]
      %v501 = vld [vmem:[#allocation2] sm:$0xff]
      %v502 = vld [vmem:[#allocation2 + $0x8] sm:$0xff]
      %v503 = vld [vmem:[#allocation2 + $0x10] sm:$0xff]
      %v504 = vld [vmem:[#allocation2 + $0x18] sm:$0xf]
      %vm505 = vcmask 228352
      %v507 = vsel %vm505, %v500, 0
      %v510 = vsel %vm419, %v504, 0
      %512 = vmatpush.msra.mxu0 0.0
      %513 = vmatpush.msra.mxu0 0.0
      %514 = vmatpush.msra.mxu0 0.0
      %515 = vmatpush.msra.mxu0 0.0
      %516 = vmatpush.msra.mxu0 0.0
      %517 = vmatpush.msra.mxu0 0.0
      %518 = vmatpush.msra.mxu0 0.0
      %519 = vmatpush.msra.mxu0 0.0
      %520 = vmatpush.msra.mxu0 0.0
      %521 = vmatpush.msra.mxu0 0.0
      %522 = vmatpush.msra.mxu0 0.0
      %523 = vmatpush.msra.mxu0 0.0
      %524 = vmatpush.msra.mxu0 %v510
      %525 = vmatpush.msra.mxu0 %v503
      %526 = vmatpush.msra.mxu0 %v502
      %527 = vmatpush.msra.mxu0 %v501
      %528 = vmatmul.f32.gmra.mxu0 %v507
      %v529 = vpop.f32.mrf.mxu0
      %v530 = vadd.f32 0.0, %v529
      %531 = vdwg.mxu0
      %532 = vrot.lane.b32.xlu0 %v383, 1
      %v533 = vpop.permute.xlu0 %532
      %v534 = vsel %vm471, %v533, -1e+30
      %v535 = vsel %vm476, %v383, -1e+30
      %v536 = vmax.f32 %v534, %v535
      %537 = vrot.lane.b32.xlu0 %v383, 127
      %v538 = vpop.permute.xlu0 %537
      %v539 = vsel %vm483, %v538, -1e+30
      %v540 = vmax.f32 %v536, %v539
      %541 = vrot.lane.b32.xlu0 %v540, 1
      %v542 = vpop.permute.xlu0 %541
      %v543 = vsel %vm471, %v542, 0.0
      %544 = vst [vmem:[#allocation3] sm:$0xf] %v543
      %v545 = vsel %vm476, %v540, 0.0
      %546 = vst [vmem:[#allocation3 + $0x4] sm:$0xf] %v545
      %547 = vrot.lane.b32.xlu0 %v540, 127
      %v548 = vpop.permute.xlu0 %547
      %v549 = vsel %vm483, %v548, 0.0
      %550 = vst [vmem:[#allocation3 + $0x8] sm:$0xf] %v549
      %551 = vrot.lane.b32.xlu0 %v540, 126
      %v552 = vpop.permute.xlu0 %551
      %v553 = vsel %vm490, %v552, 0.0
      %554 = vst [vmem:[#allocation3 + $0xc] sm:$0xf] %v553
      %v555 = vld [vmem:[%s5] sm:$0x3]
      %v556 = vld [vmem:[#allocation3] sm:$0xff]
      %v557 = vld [vmem:[#allocation3 + $0x8] sm:$0xff]
      %vm558 = vcmask 130048
      %v560 = vsel %vm558, %v555, 0
      %562 = vmatpush.msra.mxu0 0.0
      %563 = vmatpush.msra.mxu0 0.0
      %564 = vmatpush.msra.mxu0 0.0
      %565 = vmatpush.msra.mxu0 0.0
      %566 = vmatpush.msra.mxu0 0.0
      %567 = vmatpush.msra.mxu0 0.0
      %568 = vmatpush.msra.mxu0 0.0
      %569 = vmatpush.msra.mxu0 0.0
      %570 = vmatpush.msra.mxu0 0.0
      %571 = vmatpush.msra.mxu0 0.0
      %572 = vmatpush.msra.mxu0 0.0
      %573 = vmatpush.msra.mxu0 0.0
      %574 = vmatpush.msra.mxu0 0.0
      %575 = vmatpush.msra.mxu0 0.0
      %576 = vmatpush.msra.mxu0 %v557
      %577 = vmatpush.msra.mxu0 %v556
      %578 = vmatmul.f32.gmra.mxu0 %v560
      %v579 = vpop.f32.mrf.mxu0
      %v580 = vadd.f32 0.0, %v579
      %581 = vdwg.mxu0
      %p582 = scmp.eq.s32.totalorder %s25, 0
      %p583 = scmp.eq.s32.totalorder %s26, 0
      %p584 = pnand %p582, %p583
      %p585 = pneg %p584
      // Predicated region
      $region61: #{inception_block_forward.1} parent=59 // pred_check
        _
      $region62: #{inception_block_forward.1} parent=59 // pred_check_branch
        %587 = sbr.rel (%p584) target = $region64
      $region63: #{inception_block_forward.1} parent=59 // pred_region
        %vm588 = vcmask 7168
        %589 = vst.msk [vmem:[#allocation4] sm:$0xff] %vm588, 0.0
        %590 = vst.msk [vmem:[#allocation5] sm:$0xff] %vm588, 0.0
        %591 = vst.msk [vmem:[#allocation6] sm:$0xff] %vm588, 0.0
        %592 = vst.msk [vmem:[#allocation7] sm:$0xff] %vm588, 0.0
      $region64: #{inception_block_forward.1} parent=59 // pred_fallthru
        _
      // Predicated region
      $region65: #{inception_block_forward.1} parent=59 // pred_check
        %p593 = pneg %p582
      $region66: #{inception_block_forward.1} parent=59 // pred_check_branch
        %595 = sbr.rel (%p593) target = $region68
      $region67: #{inception_block_forward.1} parent=59 // pred_region
        %v596 = vsel %vm382, 1, 0
        %v597 = vperm.slane %v596, 0
        %vm598 = vcmp.eq.s32.totalorder %v597, 1
        %v599 = vsel %vm598, %v530, 0.0
        %v600 = vld [vmem:[#allocation4] sm:$0x3f]
        %vm601 = vcmask 1045504
        %v602 = vsel %vm601, %v599, 0.0
        %603 = vadd.xlane.f32.xlu0 %v602
        %v604 = vpop.xlane.xlu0 %603
        %v605 = vadd.f32 %v600, %v604
        %vm606 = vcmask 5120
        %607 = vst.msk [vmem:[#allocation4] sm:$0x3f] %vm606, %v605
        %v608 = vld [vmem:[#allocation5] sm:$0x3f]
        %v609 = vmul.f32 %v599, %v599
        %v610 = vsel %vm601, %v609, 0.0
        %611 = vadd.xlane.f32.xlu0 %v610
        %v612 = vpop.xlane.xlu0 %611
        %v613 = vadd.f32 %v608, %v612
        %614 = vst.msk [vmem:[#allocation5] sm:$0x3f] %vm606, %v613
        %v615 = vsel %vm598, %v580, 0.0
        %v616 = vld [vmem:[#allocation4 + $0x6] sm:$0x3]
        %vm617 = vcmask 1041408
        %v618 = vsel %vm617, %v615, 0.0
        %619 = vadd.xlane.f32.xlu0 %v618
        %v620 = vpop.xlane.xlu0 %619
        %v621 = vadd.f32 %v616, %v620
        %vm622 = vcmask 1024
        %623 = vst.msk [vmem:[#allocation4 + $0x6] sm:$0x3] %vm622, %v621
        %v624 = vld [vmem:[#allocation5 + $0x6] sm:$0x3]
        %v625 = vmul.f32 %v615, %v615
        %v626 = vsel %vm617, %v625, 0.0
        %627 = vadd.xlane.f32.xlu0 %v626
        %v628 = vpop.xlane.xlu0 %627
        %v629 = vadd.f32 %v624, %v628
        %630 = vst.msk [vmem:[#allocation5 + $0x6] sm:$0x3] %vm622, %v629
        %v631 = vsel %vm598, %v441, 0.0
        %v632 = vsel %vm598, %v444, 0.0
        %v633 = vld [vmem:[#allocation6] sm:$0xff]
        %vm634 = vcmask 1047556
        %v635 = vsel %vm634, %v631, 0.0
        %636 = vadd.xlane.f32.xlu0 %v635
        %v637 = vpop.xlane.xlu0 %636
        %v638 = vsel %vm419, %v632, 0.0
        %639 = vadd.xlane.f32.xlu0 %v638
        %v640 = vpop.xlane.xlu0 %639
        %v643 = vrot.slane %v637, 4
        %v644 = vrot.slane %v640, 4
        %v645 = vsel %vm419, %v643, %v644
        %v647 = vadd.f32 %v633, %v645
        %vm648 = vcmask 7168
        %649 = vst.msk [vmem:[#allocation6] sm:$0xff] %vm648, %v647
        %v650 = vld [vmem:[#allocation7] sm:$0xff]
        %v651 = vmul.f32 %v631, %v631
        %v652 = vmul.f32 %v632, %v632
        %v653 = vsel %vm634, %v651, 0.0
        %654 = vadd.xlane.f32.xlu0 %v653
        %v655 = vpop.xlane.xlu0 %654
        %v656 = vsel %vm419, %v652, 0.0
        %657 = vadd.xlane.f32.xlu0 %v656
        %v658 = vpop.xlane.xlu0 %657
        %v661 = vrot.slane %v655, 4
        %v662 = vrot.slane %v658, 4
        %v663 = vsel %vm419, %v661, %v662
        %v665 = vadd.f32 %v650, %v663
        %666 = vst.msk [vmem:[#allocation7] sm:$0xff] %vm648, %v665
      $region68: #{inception_block_forward.1} parent=59 // pred_fallthru
        _
      %p667 = scmp.eq.s32.totalorder %s25, 1
      // Predicated region
      $region69: #{inception_block_forward.1} parent=59 // pred_check
        %p668 = pneg %p667
      $region70: #{inception_block_forward.1} parent=59 // pred_check_branch
        %670 = sbr.rel (%p668) target = $region72
      $region71: #{inception_block_forward.1} parent=59 // pred_region
        %v671 = vld [vmem:[#allocation4] sm:$0xff]
        %v672 = vmul.f32 %v671, 0.03125
        %v673 = vld [vmem:[#allocation5] sm:$0xff]
        %v674 = vmul.f32 %v673, 0.03125
        %v675 = vmul.f32 %v672, %v672
        %v676 = vsub.f32 %v674, %v675
        %v677 = vld [vmem:[%s6] sm:$0xff]
        %v678 = vadd.f32 %v676, 1e-05
        %v679 = vrsqrt.pop %v678
        %v680 = vmul.f32 %v679, %v678
        %v681 = vmul.f32 %v680, %v679
        %v682 = vmul.f32 0.5, %v681
        %v683 = vsub.f32 1.5, %v682
        %v684 = vmul.f32 %v679, %v683
        %vm685 = vweird.f32 %v678
        %vm686 = vweird.f32 %v679
        %vm687 = vmor %vm685, %vm686
        %v688 = vsel %vm687, %v679, %v684
        %v689 = vmul.f32 %v677, %v688
        %v690 = vld [vmem:[%s7] sm:$0xff]
        %v691 = vmul.f32 %v672, %v689
        %v692 = vsub.f32 %v690, %v691
        %v693 = vld [vmem:[#allocation6] sm:$0xff]
        %v694 = vmul.f32 %v693, 0.03125
        %v695 = vld [vmem:[#allocation7] sm:$0xff]
        %v696 = vmul.f32 %v695, 0.03125
        %v697 = vmul.f32 %v694, %v694
        %v698 = vsub.f32 %v696, %v697
        %v699 = vld [vmem:[%s8] sm:$0xff]
        %v700 = vadd.f32 %v698, 1e-05
        %v701 = vrsqrt.pop %v700
        %v702 = vmul.f32 %v701, %v700
        %v703 = vmul.f32 %v702, %v701
        %v704 = vmul.f32 0.5, %v703
        %v705 = vsub.f32 1.5, %v704
        %v706 = vmul.f32 %v701, %v705
        %vm707 = vweird.f32 %v700
        %vm708 = vweird.f32 %v701
        %vm709 = vmor %vm707, %vm708
        %v710 = vsel %vm709, %v701, %v706
        %v711 = vmul.f32 %v699, %v710
        %v712 = vld [vmem:[%s9] sm:$0xff]
        %v713 = vmul.f32 %v694, %v711
        %v714 = vsub.f32 %v712, %v713
        %716 = vset.pattern.permute.xlu0 0
        %717 = vperm.xlu0 %716, %v711
        %v718 = vpop.permute.xlu0 %717
        %v719 = vrot.slane %v718, 4
        %v721 = vmul.f32 %v441, %v719
        %v722 = vmul.f32 %v444, %v719
        %724 = vset.pattern.permute.xlu0 0
        %725 = vperm.xlu0 %724, %v714
        %v726 = vpop.permute.xlu0 %725
        %v727 = vrot.slane %v726, 4
        %v729 = vadd.f32 %v721, %v727
        %v730 = vadd.f32 %v722, %v727
        %732 = vset.pattern.permute.xlu0 0
        %733 = vperm.xlu0 %732, %v689
        %v734 = vpop.permute.xlu0 %733
        %v736 = vmul.f32 %v530, %v734
        %738 = vset.pattern.permute.xlu0 0
        %739 = vperm.xlu0 %738, %v692
        %v740 = vpop.permute.xlu0 %739
        %v742 = vadd.f32 %v736, %v740
        %v745 = vrot.slane %v729, 4
        %v746 = vrot.slane %v730, 4
        %v747 = vsel %vm419, %v745, %v746
        %v749 = vadd.f32 %v742, %v747
        %v750 = vmax.f32 %v749, 0.0
        %751 = vst [vmem:[%s380] sm:$0x3f] %v750
        %v752 = vrot.slane %v734, 6
        %v754 = vmul.f32 %v580, %v752
        %v755 = vrot.slane %v740, 6
        %v757 = vadd.f32 %v754, %v755
        %v758 = vrot.slane %v730, 2
        %v760 = vadd.f32 %v757, %v758
        %v761 = vmax.f32 %v760, 0.0
        %762 = vst [vmem:[%s380 + $0x6] sm:$0x3] %v761
      $region72: #{inception_block_forward.1} parent=59 // pred_fallthru
        _
      %p763 = scmp.lt.s32.totalorder %s26, 0
      %s764 = scalar_select %p763, %s26, 0
      %s765 = smul.addr %s764, 8
      %s766 = scalar_lea.vmem %s10, %s765
      // Predicated region
      $region73: #{inception_block_forward.1} parent=59 // pred_check
        %p767 = pneg %p271
      $region74: #{inception_block_forward.1} parent=59 // pred_check_branch
        %769 = sbr.rel (%p767) target = $region76
      $region75: #{inception_block_forward.1} parent=59 // pred_region
        _
      $region76: #{inception_block_forward.1} parent=59 // pred_fallthru
        _
      // Predicated region
      $region77: #{inception_block_forward.1} parent=59 // pred_check
        %p770 = pneg %p271
      $region78: #{inception_block_forward.1} parent=59 // pred_check_branch
        %772 = sbr.rel (%p770) target = $region80
      $region79: #{inception_block_forward.1} parent=59 // pred_region
        %p773 = scmp.lt.s32.totalorder %s26, 0
        %s774 = scalar_select %p773, %s26, 0
        %s775 = smul.addr %s774, 8
        %s776 = scalar_lea.vmem %s10, %s775
      $region80: #{inception_block_forward.1} parent=59 // pred_fallthru
        _
    $region60: #{inception_block_forward.1} parent=5 // pred_fallthru
      _
    %p777 = scmp.le.s32.totalorder 2, %s16
    // Predicated region
    $region81: #{inception_block_forward.1} parent=5 // pred_check
      %p778 = pneg %p777
    $region82: #{inception_block_forward.1} parent=5 // pred_check_branch
      %780 = sbr.rel (%p778) target = $region84
    $region83: #{inception_block_forward.1} parent=5 // pred_region
      %s781 = ssub.s32 %s16, 2
    $region84: #{inception_block_forward.1} parent=5 // pred_fallthru
      _
  $region6: #{inception_block_forward.1} parent=0 // loop_footer
    %s20 = sadd.s32 1, %s16
  $region7: #{inception_block_forward.1} parent=0 // loop_footer_branch
    %15 = sbr.rel target = $region3
  $region8: #{inception_block_forward.1} parent=0 // loop_exit
    _

</llo_original>
